<compile_context>
chip_gen: v7x
topology: tpu7x:2x2x1
jax: 0.10.0
libtpu: 0.0.40
codegen_flags: <defaults>
</compile_context>

<pallas_src>
import functools

import jax
import jax.numpy as jnp
from jax.experimental import pallas as pl
from jax.experimental.pallas import tpu as pltpu


def _round_up(x, m):
    return (x + m - 1) // m * m


def _default_vmem_limit_bytes():
    """128 MiB-VMEM chips (v4/v5e/v6e) get a generous scoped limit; v7x (64 MiB
    per TensorCore) and unknown chips stay conservative."""
    try:
        kind = jax.devices()[0].device_kind.lower()
    except Exception:
        kind = ""
    if any(tag in kind for tag in ("v4", "v5", "v6")):
        return 96 * 1024 * 1024
    return 48 * 1024 * 1024


def _attention_kernel(x_ref, wq_ref, wk_ref, wv_ref, wout_ref, bout_ref,
                      o_ref, k_sc, v_sc, *, heads, dim_head, block_q, n_valid):
    """One (batch, q-tile) grid step.

    x_ref    : (1, Np, Dp)   full (padded) sequence of this batch element
    wq_ref   : (Dp, inner)   W_q with the softmax scale pre-folded
    wk_ref   : (Dp, inner)   W_k
    wv_ref   : (Dp, inner)   W_v
    wout_ref : (inner, Dp)   W_out
    bout_ref : (1, Dp)       output bias
    o_ref    : (1, tq, Dp)   output tile (lane-dense: Dp % 128 == 0)
    k_sc/v_sc: (H, Np, dh)   per-batch K/V cache in VMEM scratch
    """
    qi = pl.program_id(1)
    inner = heads * dim_head
    npad = k_sc.shape[1]
    cdtype = k_sc.dtype  # compute dtype (== x.dtype): bf16 in, bf16 MXU ops.

    # --- K/V projections: once per batch element, cached for all q-tiles. ---
    @pl.when(qi == 0)
    def _():
        x_full = x_ref[0]                                         # (Np, Dp)
        k = jnp.dot(x_full, wk_ref[...], preferred_element_type=jnp.float32)
        v = jnp.dot(x_full, wv_ref[...], preferred_element_type=jnp.float32)
        # Head-major relayout happens once per batch (amortized over q-tiles).
        k_sc[...] = k.reshape(npad, heads, dim_head).swapaxes(0, 1).astype(cdtype)
        v_sc[...] = v.reshape(npad, heads, dim_head).swapaxes(0, 1).astype(cdtype)

    # --- Q projection for this tile (q rows sliced from the resident block). ---
    row0 = pl.multiple_of(qi * block_q, block_q)
    xq = x_ref[0, pl.ds(row0, block_q), :]                         # (tq, Dp)
    q = jnp.dot(xq, wq_ref[...], preferred_element_type=jnp.float32)
    qh = q.reshape(block_q, heads, dim_head).swapaxes(0, 1).astype(cdtype)

    kh = k_sc[...]                                                 # (H, Np, dh)
    vh = v_sc[...]

    # Q K^T batched over heads (scale already folded into W_q), f32 accumulate.
    dots = jnp.einsum("hqd,hkd->hqk", qh, kh,
                      preferred_element_type=jnp.float32)          # (H, tq, Np)

    # Mask padded key rows (static no-op when the sequence needed no padding).
    if n_valid < npad:
        key_idx = jax.lax.broadcasted_iota(jnp.int32, (1, 1, npad), 2)
        dots = jnp.where(key_idx < n_valid, dots, -1e30)

    # Numerically-stable softmax in f32; exp + approximate reciprocal run on
    # the EUP slot, off the VPU critical path.
    m = jnp.max(dots, axis=-1, keepdims=True)
    p = jnp.exp(dots - m)
    denom = jnp.sum(p, axis=-1, keepdims=True)
    attn = (p * pl.reciprocal(denom, approx=True)).astype(cdtype)

    # attn @ V batched over heads.
    ctx = jnp.einsum("hqk,hkd->hqd", attn, vh,
                     preferred_element_type=jnp.float32)           # (H, tq, dh)

    # Single fused output projection: (tq, inner) @ (inner, Dp).
    ctx_cat = ctx.swapaxes(0, 1).reshape(block_q, inner).astype(wout_ref.dtype)
    out = jnp.dot(ctx_cat, wout_ref[...], preferred_element_type=jnp.float32)
    out = out + bout_ref[...].astype(jnp.float32)                  # (tq, Dp)

    o_ref[0] = out.astype(o_ref.dtype)


def attention_forward(x, w_qkv, w_out, b_out, *, heads, dim_head,
                      block_q=256, vmem_limit_bytes=None, interpret=False):
    """x: (B, N, D). w_qkv: (D, 3*inner). w_out: (inner, D). b_out: (1, D)."""
    B, N, D = x.shape
    inner = heads * dim_head
    assert w_qkv.shape == (D, 3 * inner)
    assert w_out.shape == (inner, D)
    assert b_out.shape == (1, D)
    scale = float(dim_head) ** -0.5
    if vmem_limit_bytes is None:
        vmem_limit_bytes = _default_vmem_limit_bytes()

    # Lane-dense feature dim: zero-pad D up to a multiple of 128; true D is
    # sliced back off after the kernel (padded weight rows / bias lanes are 0).
    Dp = _round_up(D, 128)
    # q tile: multiple of 8 sublanes; pad N up to a multiple of it (padded key
    # rows are masked in-kernel, padded query rows are sliced off here).
    tq = min(block_q, _round_up(N, 8))
    Np = _round_up(N, tq)
    pad_n, pad_d = Np - N, Dp - D

    x_p = jnp.pad(x, ((0, 0), (0, pad_n), (0, pad_d))) if (pad_n or pad_d) else x

    w_q, w_k, w_v = jnp.split(w_qkv, 3, axis=1)            # each (D, inner)
    w_q = w_q * scale                                       # fold softmax scale
    if pad_d:
        rows = ((0, pad_d), (0, 0))
        w_q, w_k, w_v = jnp.pad(w_q, rows), jnp.pad(w_k, rows), jnp.pad(w_v, rows)
        w_out_p = jnp.pad(w_out, ((0, 0), (0, pad_d)))
        b_out_p = jnp.pad(b_out, ((0, 0), (0, pad_d)))
    else:
        w_out_p, b_out_p = w_out, b_out

    # Keep all MXU operands in the compute dtype of x (bf16 path stays bf16).
    cdtype = x.dtype
    w_q, w_k, w_v = w_q.astype(cdtype), w_k.astype(cdtype), w_v.astype(cdtype)
    w_out_p = w_out_p.astype(cdtype)

    # Grid: batch is independent ("parallel", megacore sharding); q-tiles must
    # run in order within a batch ("arbitrary") so the K/V scratch cache is
    # filled at q-tile 0 and reused afterwards.
    grid = (B, Np // tq)

    kernel = functools.partial(_attention_kernel, heads=heads,
                               dim_head=dim_head, block_q=tq, n_valid=N)

    out_p = pl.pallas_call(
        kernel,
        out_shape=jax.ShapeDtypeStruct((B, Np, Dp), x.dtype),
        grid_spec=pltpu.PrefetchScalarGridSpec(
            num_scalar_prefetch=0,
            grid=grid,
            in_specs=[
                pl.BlockSpec((1, Np, Dp), lambda b, qi: (b, 0, 0)),   # x (full seq)
                pl.BlockSpec((Dp, inner), lambda b, qi: (0, 0)),      # W_q * scale
                pl.BlockSpec((Dp, inner), lambda b, qi: (0, 0)),      # W_k
                pl.BlockSpec((Dp, inner), lambda b, qi: (0, 0)),      # W_v
                pl.BlockSpec((inner, Dp), lambda b, qi: (0, 0)),      # W_out
                pl.BlockSpec((1, Dp), lambda b, qi: (0, 0)),          # bias
            ],
            out_specs=pl.BlockSpec((1, tq, Dp), lambda b, qi: (b, qi, 0)),
            scratch_shapes=[
                pltpu.VMEM((heads, Np, dim_head), cdtype),            # K cache
                pltpu.VMEM((heads, Np, dim_head), cdtype),            # V cache
            ],
        ),
        compiler_params=pltpu.CompilerParams(
            dimension_semantics=("parallel", "arbitrary"),
            vmem_limit_bytes=vmem_limit_bytes,
        ),
        interpret=interpret,
    )(x_p, w_q, w_k, w_v, w_out_p, b_out_p)

    return out_p[:, :N, :D] if (pad_n or pad_d) else out_p


def attention_reference(x, w_qkv, w_out, b_out, *, heads, dim_head):
    """Pure-JAX reference matching the PyTorch attention module (dropout p=0)."""
    B, N, D = x.shape
    inner = heads * dim_head
    scale = float(dim_head) ** -0.5
    qkv = x @ w_qkv                                        # (B, N, 3*inner)
    q, k, v = jnp.split(qkv, 3, axis=-1)

    def to_heads(t):                                       # b n (h d) -> b h n d
        return t.reshape(B, N, heads, dim_head).transpose(0, 2, 1, 3)

    q, k, v = map(to_heads, (q, k, v))
    dots = jnp.einsum("bhnd,bhmd->bhnm", q, k) * scale
    attn = jax.nn.softmax(dots, axis=-1)
    out = jnp.einsum("bhnm,bhmd->bhnd", attn, v)
    out = out.transpose(0, 2, 1, 3).reshape(B, N, inner)   # b h n d -> b n (h d)
    return out @ w_out + b_out[0]


if __name__ == "__main__":
    # Small, module-consistent shapes.
    B, N, D = 2, 8, 32
    heads, dim_head = 2, 16
    inner = heads * dim_head

    key = jax.random.PRNGKey(0)
    kx, kq, kw, kb, kx2 = jax.random.split(key, 5)

    x = jax.random.normal(kx, (B, N, D), dtype=jnp.float32)
    w_qkv = (jax.random.normal(kq, (D, 3 * inner), dtype=jnp.float32)
             * (1.0 / jnp.sqrt(D)))
    w_out = (jax.random.normal(kw, (inner, D), dtype=jnp.float32)
             * (1.0 / jnp.sqrt(inner)))
    b_out = jax.random.normal(kb, (1, D), dtype=jnp.float32) * 0.01

    out = attention_forward(x, w_qkv, w_out, b_out,
                            heads=heads, dim_head=dim_head)
    out = jax.block_until_ready(out)
    ref = attention_reference(x, w_qkv, w_out, b_out,
                              heads=heads, dim_head=dim_head)
    assert out.shape == (B, N, D)
    # Tolerance accounts for the approximate (EUP) reciprocal in the softmax.
    assert jnp.allclose(out, ref, atol=2e-3, rtol=2e-3), "mismatch vs reference"

    # Ragged sequence length (exercises the N-padding + key-mask path that
    # replaced the old `assert N % tq == 0`).
    N2 = 6
    x2 = jax.random.normal(kx2, (1, N2, D), dtype=jnp.float32)
    out2 = attention_forward(x2, w_qkv, w_out, b_out,
                             heads=heads, dim_head=dim_head)
    out2 = jax.block_until_ready(out2)
    ref2 = attention_reference(x2, w_qkv, w_out, b_out,
                               heads=heads, dim_head=dim_head)
    assert out2.shape == (1, N2, D)
    assert jnp.allclose(out2, ref2, atol=2e-3, rtol=2e-3), "mismatch (padded N)"

    print("KERNEL_OK")
</pallas_src>

<mosaic_0001>
module attributes {stable_mosaic.version = 11 : i64} {
  func.func @_attention_kernel(%arg0: i32, %arg1: i32, %arg2: memref<1x8x128xf32, #tpu.memory_space<vmem>>, %arg3: memref<128x32xf32, #tpu.memory_space<vmem>>, %arg4: memref<128x32xf32, #tpu.memory_space<vmem>>, %arg5: memref<128x32xf32, #tpu.memory_space<vmem>>, %arg6: memref<32x128xf32, #tpu.memory_space<vmem>>, %arg7: memref<1x128xf32, #tpu.memory_space<vmem>>, %arg8: memref<1x8x128xf32, #tpu.memory_space<vmem>>, %arg9: memref<2x8x16xf32, #tpu.memory_space<vmem>>, %arg10: memref<2x8x16xf32, #tpu.memory_space<vmem>>) attributes {dimension_semantics = [#tpu.dimension_semantics<parallel>, #tpu.dimension_semantics<arbitrary>], iteration_bounds = array<i64: 2, 1>, scalar_prefetch = 0 : i64, scratch_operands = 2 : i64, tpu.core_type = #tpu.core_type<tc>, window_params = [{transform_indices = @transform_0, window_bounds = array<i64: 1, 8, 128>}, {pipeline_mode = #tpu.pipeline_mode<synchronous>, transform_indices = @transform_1, window_bounds = array<i64: 128, 32>}, {pipeline_mode = #tpu.pipeline_mode<synchronous>, transform_indices = @transform_2, window_bounds = array<i64: 128, 32>}, {pipeline_mode = #tpu.pipeline_mode<synchronous>, transform_indices = @transform_3, window_bounds = array<i64: 128, 32>}, {pipeline_mode = #tpu.pipeline_mode<synchronous>, transform_indices = @transform_4, window_bounds = array<i64: 32, 128>}, {pipeline_mode = #tpu.pipeline_mode<synchronous>, transform_indices = @transform_5, window_bounds = array<i64: 1, 128>}, {transform_indices = @transform_6, window_bounds = array<i64: 1, 8, 128>}]} {
    %c0_i32 = arith.constant 0 : i32
    %0 = arith.cmpi eq, %arg1, %c0_i32 : i32
    %1 = arith.extui %0 : i1 to i32
    %c0_i32_0 = arith.constant 0 : i32
    %2 = arith.cmpi ne, %1, %c0_i32_0 : i32
    scf.if %2 {
      %c0_22 = arith.constant 0 : index
      %c0_23 = arith.constant 0 : index
      %c0_24 = arith.constant 0 : index
      %36 = vector.load %arg2[%c0_22, %c0_23, %c0_24] : memref<1x8x128xf32, #tpu.memory_space<vmem>>, vector<1x8x128xf32>
      %37 = vector.shape_cast %36 : vector<1x8x128xf32> to vector<8x128xf32>
      %c0_25 = arith.constant 0 : index
      %c0_26 = arith.constant 0 : index
      %38 = vector.load %arg4[%c0_25, %c0_26] : memref<128x32xf32, #tpu.memory_space<vmem>>, vector<128x32xf32>
      %cst_27 = arith.constant dense<0.000000e+00> : vector<8x32xf32>
      %39 = tpu.matmul %37, %38, %cst_27 {dimension_numbers = #tpu.dot_dimension_numbers<[1], [0], [0], [1], [0, 0, 1, 1], [], []>} : vector<8x128xf32>, vector<128x32xf32>, vector<8x32xf32> -> vector<8x32xf32>
      %c0_28 = arith.constant 0 : index
      %c0_29 = arith.constant 0 : index
      %40 = vector.load %arg5[%c0_28, %c0_29] : memref<128x32xf32, #tpu.memory_space<vmem>>, vector<128x32xf32>
      %cst_30 = arith.constant dense<0.000000e+00> : vector<8x32xf32>
      %41 = tpu.matmul %37, %40, %cst_30 {dimension_numbers = #tpu.dot_dimension_numbers<[1], [0], [0], [1], [0, 0, 1, 1], [], []>} : vector<8x128xf32>, vector<128x32xf32>, vector<8x32xf32> -> vector<8x32xf32>
      %42 = vector.shape_cast %39 : vector<8x32xf32> to vector<8x2x16xf32>
      %43 = tpu.transpose %42, [1, 0, 2] : vector<8x2x16xf32> -> vector<2x8x16xf32>
      %c0_31 = arith.constant 0 : index
      %c0_32 = arith.constant 0 : index
      %c0_33 = arith.constant 0 : index
      %44 = vector.load %arg9[%c0_31, %c0_32, %c0_33] : memref<2x8x16xf32, #tpu.memory_space<vmem>>, vector<2x8x16xf32>
      tpu.vector_store %arg9[%c0_31, %c0_32, %c0_33], %43 {strides = array<i32>} : memref<2x8x16xf32, #tpu.memory_space<vmem>>, vector<2x8x16xf32>,
      %45 = vector.shape_cast %41 : vector<8x32xf32> to vector<8x2x16xf32>
      %46 = tpu.transpose %45, [1, 0, 2] : vector<8x2x16xf32> -> vector<2x8x16xf32>
      %c0_34 = arith.constant 0 : index
      %c0_35 = arith.constant 0 : index
      %c0_36 = arith.constant 0 : index
      %47 = vector.load %arg10[%c0_34, %c0_35, %c0_36] : memref<2x8x16xf32, #tpu.memory_space<vmem>>, vector<2x8x16xf32>
      tpu.vector_store %arg10[%c0_34, %c0_35, %c0_36], %46 {strides = array<i32>} : memref<2x8x16xf32, #tpu.memory_space<vmem>>, vector<2x8x16xf32>,
    } else {
    }
    %c8_i32 = arith.constant 8 : i32
    %3 = arith.muli %arg1, %c8_i32 : i32
    %4 = tpu.assume_multiple %3, 8 : i32
    %c0 = arith.constant 0 : index
    %5 = arith.index_cast %4 : i32 to index
    %c0_1 = arith.constant 0 : index
    %6 = vector.load %arg2[%c0, %5, %c0_1] : memref<1x8x128xf32, #tpu.memory_space<vmem>>, vector<1x8x128xf32>
    %7 = vector.shape_cast %6 : vector<1x8x128xf32> to vector<8x128xf32>
    %c0_2 = arith.constant 0 : index
    %c0_3 = arith.constant 0 : index
    %8 = vector.load %arg3[%c0_2, %c0_3] : memref<128x32xf32, #tpu.memory_space<vmem>>, vector<128x32xf32>
    %cst = arith.constant dense<0.000000e+00> : vector<8x32xf32>
    %9 = tpu.matmul %7, %8, %cst {dimension_numbers = #tpu.dot_dimension_numbers<[1], [0], [0], [1], [0, 0, 1, 1], [], []>} : vector<8x128xf32>, vector<128x32xf32>, vector<8x32xf32> -> vector<8x32xf32>
    %10 = vector.shape_cast %9 : vector<8x32xf32> to vector<8x2x16xf32>
    %11 = tpu.transpose %10, [1, 0, 2] : vector<8x2x16xf32> -> vector<2x8x16xf32>
    %c0_4 = arith.constant 0 : index
    %c0_5 = arith.constant 0 : index
    %c0_6 = arith.constant 0 : index
    %12 = vector.load %arg9[%c0_4, %c0_5, %c0_6] : memref<2x8x16xf32, #tpu.memory_space<vmem>>, vector<2x8x16xf32>
    %c0_7 = arith.constant 0 : index
    %c0_8 = arith.constant 0 : index
    %c0_9 = arith.constant 0 : index
    %13 = vector.load %arg10[%c0_7, %c0_8, %c0_9] : memref<2x8x16xf32, #tpu.memory_space<vmem>>, vector<2x8x16xf32>
    "tpu.trace_start"() <{level = 10 : i32, message = "hqd,hkd->hqk"}> : () -> ()
    %cst_10 = arith.constant dense<0.000000e+00> : vector<2x8x8xf32>
    %14 = tpu.matmul %11, %12, %cst_10 {dimension_numbers = #tpu.dot_dimension_numbers<[2], [2], [1], [1], [0, 0, 0, 1, 1, 1], [0], [0]>} : vector<2x8x16xf32>, vector<2x8x16xf32>, vector<2x8x8xf32> -> vector<2x8x8xf32>
    "tpu.trace_stop"() : () -> ()
    %cst_11 = arith.constant dense<0xFF800000> : vector<2x8xf32>
    %15 = vector.multi_reduction <maximumf>, %14, %cst_11 [2] : vector<2x8x8xf32> to vector<2x8xf32>
    %16 = vector.shape_cast %15 : vector<2x8xf32> to vector<2x8x1xf32>
    %17 = vector.broadcast %16 : vector<2x8x1xf32> to vector<2x8x8xf32>
    %18 = arith.subf %14, %17 : vector<2x8x8xf32>
    %19 = math.exp %18 : vector<2x8x8xf32>
    %cst_12 = arith.constant dense<0.000000e+00> : vector<2x8xf32>
    %20 = vector.multi_reduction <add>, %19, %cst_12 [2] : vector<2x8x8xf32> to vector<2x8xf32>
    %21 = vector.shape_cast %20 : vector<2x8xf32> to vector<2x8x1xf32>
    %22 = tpu.reciprocal %21 {approx = true} : vector<2x8x1xf32> -> vector<2x8x1xf32>
    %23 = vector.broadcast %22 : vector<2x8x1xf32> to vector<2x8x8xf32>
    %24 = arith.mulf %19, %23 : vector<2x8x8xf32>
    "tpu.trace_start"() <{level = 10 : i32, message = "hqk,hkd->hqd"}> : () -> ()
    %cst_13 = arith.constant dense<0.000000e+00> : vector<2x8x16xf32>
    %25 = tpu.matmul %24, %13, %cst_13 {dimension_numbers = #tpu.dot_dimension_numbers<[2], [1], [1], [2], [0, 0, 0, 1, 1, 2], [0], [0]>} : vector<2x8x8xf32>, vector<2x8x16xf32>, vector<2x8x16xf32> -> vector<2x8x16xf32>
    "tpu.trace_stop"() : () -> ()
    %26 = tpu.transpose %25, [1, 0, 2] : vector<2x8x16xf32> -> vector<8x2x16xf32>
    %27 = vector.shape_cast %26 : vector<8x2x16xf32> to vector<8x32xf32>
    %c0_14 = arith.constant 0 : index
    %c0_15 = arith.constant 0 : index
    %28 = vector.load %arg6[%c0_14, %c0_15] : memref<32x128xf32, #tpu.memory_space<vmem>>, vector<32x128xf32>
    %cst_16 = arith.constant dense<0.000000e+00> : vector<8x128xf32>
    %29 = tpu.matmul %27, %28, %cst_16 {dimension_numbers = #tpu.dot_dimension_numbers<[1], [0], [0], [1], [0, 0, 1, 1], [], []>} : vector<8x32xf32>, vector<32x128xf32>, vector<8x128xf32> -> vector<8x128xf32>
    %c0_17 = arith.constant 0 : index
    %c0_18 = arith.constant 0 : index
    %30 = vector.load %arg7[%c0_17, %c0_18] : memref<1x128xf32, #tpu.memory_space<vmem>>, vector<1x128xf32>
    %31 = vector.broadcast %30 : vector<1x128xf32> to vector<8x128xf32>
    %32 = arith.addf %29, %31 : vector<8x128xf32>
    %c0_19 = arith.constant 0 : index
    %c0_20 = arith.constant 0 : index
    %c0_21 = arith.constant 0 : index
    %33 = vector.load %arg8[%c0_19, %c0_20, %c0_21] : memref<1x8x128xf32, #tpu.memory_space<vmem>>, vector<1x8x128xf32>
    %34 = vector.shape_cast %33 : vector<1x8x128xf32> to vector<8x128xf32>
    %35 = vector.shape_cast %32 : vector<8x128xf32> to vector<1x8x128xf32>
    tpu.vector_store %arg8[%c0_19, %c0_20, %c0_21], %35 {strides = array<i32>} : memref<1x8x128xf32, #tpu.memory_space<vmem>>, vector<1x8x128xf32>,
    return
  }
  func.func @transform_0(%arg0: i32, %arg1: i32) -> (i32, i32, i32) {
    %c0_i32 = arith.constant 0 : i32
    %c0_i32_0 = arith.constant 0 : i32
    %c0_i32_1 = arith.constant 0 : i32
    return %arg0, %c0_i32, %c0_i32_0 : i32, i32, i32
  }
  func.func @transform_1(%arg0: i32, %arg1: i32) -> (i32, i32) {
    %c0_i32 = arith.constant 0 : i32
    %c0_i32_0 = arith.constant 0 : i32
    %c0_i32_1 = arith.constant 0 : i32
    return %c0_i32, %c0_i32_0 : i32, i32
  }
  func.func @transform_2(%arg0: i32, %arg1: i32) -> (i32, i32) {
    %c0_i32 = arith.constant 0 : i32
    %c0_i32_0 = arith.constant 0 : i32
    %c0_i32_1 = arith.constant 0 : i32
    return %c0_i32, %c0_i32_0 : i32, i32
  }
  func.func @transform_3(%arg0: i32, %arg1: i32) -> (i32, i32) {
    %c0_i32 = arith.constant 0 : i32
    %c0_i32_0 = arith.constant 0 : i32
    %c0_i32_1 = arith.constant 0 : i32
    return %c0_i32, %c0_i32_0 : i32, i32
  }
  func.func @transform_4(%arg0: i32, %arg1: i32) -> (i32, i32) {
    %c0_i32 = arith.constant 0 : i32
    %c0_i32_0 = arith.constant 0 : i32
    %c0_i32_1 = arith.constant 0 : i32
    return %c0_i32, %c0_i32_0 : i32, i32
  }
  func.func @transform_5(%arg0: i32, %arg1: i32) -> (i32, i32) {
    %c0_i32 = arith.constant 0 : i32
    %c0_i32_0 = arith.constant 0 : i32
    %c0_i32_1 = arith.constant 0 : i32
    return %c0_i32, %c0_i32_0 : i32, i32
  }
  func.func @transform_6(%arg0: i32, %arg1: i32) -> (i32, i32, i32) {
    %c0_i32 = arith.constant 0 : i32
    %c0_i32_0 = arith.constant 0 : i32
    return %arg0, %arg1, %c0_i32 : i32, i32, i32
  }
}

</mosaic_0001>

<llo_original>
// kernel: tpu_custom_call.1
$region0: #{tpu_custom_call.1}
  #allocation0 [shape = 'u32[]', space=smem, size = 0x4, offset = 0x4, fixed_abs, tag = 'smem constant byte address 0x4 - core index']
  #allocation1 [shape = 'u32[144,128]{1,0:T(1,128)}', space=vmem, size = 0x12000, scoped, tag = 'internal scratch']
  #allocation2 [shape = 'f32[2,8,16]{2,1,0:T(8,128)}', space=vmem, size = 0x2000, scoped, tag = 'scratch operand']
  #allocation3 [shape = 'f32[2,8,16]{2,1,0:T(8,128)}', space=vmem, size = 0x2000, scoped, tag = 'scratch operand']
  %s0 = inlined_call_operand.vmem [shape: f32[2,8,128], index: 0, kind: input, shape index: {}]
  %s1 = inlined_call_operand.vmem [shape: f32[128,32], index: 1, kind: input, shape index: {}]
  %s2 = inlined_call_operand.vmem [shape: f32[128,32], index: 2, kind: input, shape index: {}]
  %s3 = inlined_call_operand.vmem [shape: f32[128,32], index: 3, kind: input, shape index: {}]
  %s4 = inlined_call_operand.vmem [shape: f32[32,128], index: 4, kind: input, shape index: {}]
  %s5 = inlined_call_operand.vmem [shape: f32[1,128], index: 5, kind: input, shape index: {}]
  %s6 = inlined_call_operand.hbm [shape: f32[2,8,128], index: 6, kind: output, shape index: {}]
  %s7 = sld [smem:[#allocation0]]
  $region61: #{tpu_custom_call.1} parent=0
    _
  %s9 = ssub.s32 1, %s7
  %s10 = scalar_select 0, %s9, %s7
  $region1: #{tpu_custom_call.1} parent=0
    #allocation4 [shape = 'u8[8192]{0}', space=vmem, size = 0x2000, scoped, tag = 'output window, operand 0']
    #allocation5 [shape = 's32[2]{0}', space=sflag, size = 0x8, scoped, tag = 'scoped memory for tpu_custom_call.1']
    %11 = vsyncpa [#allocation5], 0
    %s12 = scalar_lea.sflag [#allocation5], 1
    %13 = vsyncpa %s12, 0
    loop: start=0, step=1, limit=4
    $region2: #{tpu_custom_call.1} parent=1 // loop_pre_header
      _
    $region3: #{tpu_custom_call.1} parent=1 // loop_header
      %s15 = sphi 0, %s19
      %p16 = scmp.ge.s32.totalorder %s15, 4
      %s22 = sphi 0, %s34
      %s23 = sphi 0, %s30
      %s24 = sphi 0, %s22
      %s25 = sphi 0, %s23
      %s26 = sphi 0, %s24
      %s27 = sphi 0, %s25
      %s37 = sphi 0, %s39
      %s40 = sphi 0, %s37
      %s41 = sphi 0, %s40
      %s57 = sphi 0, %s41
      %s61 = sphi 0, %s61
      %s63 = sphi 0, %s61
      %s64 = sphi 0, %s63
      %s78 = sphi 0, %s64
      %s82 = sphi 0, %s82
      %s84 = sphi 0, %s82
      %s85 = sphi 0, %s84
      %s99 = sphi 0, %s85
      %s103 = sphi 0, %s103
      %s105 = sphi 0, %s103
      %s106 = sphi 0, %s105
      %s120 = sphi 0, %s106
      %s124 = sphi 0, %s124
      %s126 = sphi 0, %s124
      %s127 = sphi 0, %s126
      %s141 = sphi 0, %s127
      %s145 = sphi 0, %s145
      %s147 = sphi 0, %s145
      %s148 = sphi 0, %s147
      %s162 = sphi 0, %s148
      %s170 = sphi 0, %s172
      %s173 = sphi 0, %s170
      %s174 = sphi 0, %s173
      %s190 = sphi 0, %s174
    $region4: #{tpu_custom_call.1} parent=1 // loop_header_branch
      %18 = sbr.rel (%p16) target = $region8
    $region5: #{tpu_custom_call.1} parent=1 // loop_body
      %s20 = ssub.s32 %s15, 1
      %s21 = ssub.s32 %s15, 2
      %s28 = sadd.s32 1, %s23
      %p29 = scmp.ge.s32.totalorder %s28, 1
      %s30 = scalar_select %p29, 0, %s28
      %s31 = sadd.s32 1, %s22
      %s32 = scalar_select %p29, %s31, %s22
      %p33 = scmp.ge.s32.totalorder %s32, 2
      %s34 = scalar_select %p33, 0, %s32
      %s35 = ssub.s32 %s22, %s34
      %p36 = scmp.eq.s32.totalorder %s35, 0
      %s38 = sadd.s32 %s37, 1
      %s39 = scalar_select %p36, %s37, %s38
      %p42 = pneg %p36
      %p43 = scmp.eq.s32.totalorder %s15, 1
      %p44 = por %p42, %p43
      %p45 = scmp.ne.s32.totalorder %s37, %s40
      %p46 = scmp.eq.s32.totalorder %s15, 0
      %p47 = por %p45, %p46
      %p48 = scmp.ne.s32.totalorder %s37, %s40
      %p49 = scmp.eq.s32.totalorder %s20, 1
      %p50 = por %p48, %p49
      %p51 = scmp.ne.s32.totalorder %s40, %s41
      %p52 = scmp.eq.s32.totalorder %s20, 0
      %p53 = por %p51, %p52
      %p54 = scmp.ne.s32.totalorder %s40, %s41
      %p55 = scmp.eq.s32.totalorder %s21, 1
      %p56 = por %p54, %p55
      %p58 = scmp.ne.s32.totalorder %s41, %s57
      %p59 = scmp.eq.s32.totalorder %s21, 0
      %p60 = por %p58, %p59
      %s62 = sadd.s32 %s61, 1
      %p65 = scmp.eq.s32.totalorder %s15, 1
      %p66 = scmp.ne.s32.totalorder %s61, %s63
      %p67 = scmp.eq.s32.totalorder %s15, 0
      %p68 = por %p66, %p67
      %p69 = scmp.ne.s32.totalorder %s61, %s63
      %p70 = scmp.eq.s32.totalorder %s20, 1
      %p71 = por %p69, %p70
      %p72 = scmp.ne.s32.totalorder %s63, %s64
      %p73 = scmp.eq.s32.totalorder %s20, 0
      %p74 = por %p72, %p73
      %p75 = scmp.ne.s32.totalorder %s63, %s64
      %p76 = scmp.eq.s32.totalorder %s21, 1
      %p77 = por %p75, %p76
      %p79 = scmp.ne.s32.totalorder %s64, %s78
      %p80 = scmp.eq.s32.totalorder %s21, 0
      %p81 = por %p79, %p80
      %s83 = sadd.s32 %s82, 1
      %p86 = scmp.eq.s32.totalorder %s15, 1
      %p87 = scmp.ne.s32.totalorder %s82, %s84
      %p88 = scmp.eq.s32.totalorder %s15, 0
      %p89 = por %p87, %p88
      %p90 = scmp.ne.s32.totalorder %s82, %s84
      %p91 = scmp.eq.s32.totalorder %s20, 1
      %p92 = por %p90, %p91
      %p93 = scmp.ne.s32.totalorder %s84, %s85
      %p94 = scmp.eq.s32.totalorder %s20, 0
      %p95 = por %p93, %p94
      %p96 = scmp.ne.s32.totalorder %s84, %s85
      %p97 = scmp.eq.s32.totalorder %s21, 1
      %p98 = por %p96, %p97
      %p100 = scmp.ne.s32.totalorder %s85, %s99
      %p101 = scmp.eq.s32.totalorder %s21, 0
      %p102 = por %p100, %p101
      %s104 = sadd.s32 %s103, 1
      %p107 = scmp.eq.s32.totalorder %s15, 1
      %p108 = scmp.ne.s32.totalorder %s103, %s105
      %p109 = scmp.eq.s32.totalorder %s15, 0
      %p110 = por %p108, %p109
      %p111 = scmp.ne.s32.totalorder %s103, %s105
      %p112 = scmp.eq.s32.totalorder %s20, 1
      %p113 = por %p111, %p112
      %p114 = scmp.ne.s32.totalorder %s105, %s106
      %p115 = scmp.eq.s32.totalorder %s20, 0
      %p116 = por %p114, %p115
      %p117 = scmp.ne.s32.totalorder %s105, %s106
      %p118 = scmp.eq.s32.totalorder %s21, 1
      %p119 = por %p117, %p118
      %p121 = scmp.ne.s32.totalorder %s106, %s120
      %p122 = scmp.eq.s32.totalorder %s21, 0
      %p123 = por %p121, %p122
      %s125 = sadd.s32 %s124, 1
      %p128 = scmp.eq.s32.totalorder %s15, 1
      %p129 = scmp.ne.s32.totalorder %s124, %s126
      %p130 = scmp.eq.s32.totalorder %s15, 0
      %p131 = por %p129, %p130
      %p132 = scmp.ne.s32.totalorder %s124, %s126
      %p133 = scmp.eq.s32.totalorder %s20, 1
      %p134 = por %p132, %p133
      %p135 = scmp.ne.s32.totalorder %s126, %s127
      %p136 = scmp.eq.s32.totalorder %s20, 0
      %p137 = por %p135, %p136
      %p138 = scmp.ne.s32.totalorder %s126, %s127
      %p139 = scmp.eq.s32.totalorder %s21, 1
      %p140 = por %p138, %p139
      %p142 = scmp.ne.s32.totalorder %s127, %s141
      %p143 = scmp.eq.s32.totalorder %s21, 0
      %p144 = por %p142, %p143
      %s146 = sadd.s32 %s145, 1
      %p149 = scmp.eq.s32.totalorder %s15, 1
      %p150 = scmp.ne.s32.totalorder %s145, %s147
      %p151 = scmp.eq.s32.totalorder %s15, 0
      %p152 = por %p150, %p151
      %p153 = scmp.ne.s32.totalorder %s145, %s147
      %p154 = scmp.eq.s32.totalorder %s20, 1
      %p155 = por %p153, %p154
      %p156 = scmp.ne.s32.totalorder %s147, %s148
      %p157 = scmp.eq.s32.totalorder %s20, 0
      %p158 = por %p156, %p157
      %p159 = scmp.ne.s32.totalorder %s147, %s148
      %p160 = scmp.eq.s32.totalorder %s21, 1
      %p161 = por %p159, %p160
      %p163 = scmp.ne.s32.totalorder %s148, %s162
      %p164 = scmp.eq.s32.totalorder %s21, 0
      %p165 = por %p163, %p164
      %s166 = ssub.s32 %s22, %s34
      %s167 = ssub.s32 %s23, %s30
      %s168 = sor.u32 %s166, %s167
      %p169 = scmp.eq.s32.totalorder %s168, 0
      %s171 = sadd.s32 %s170, 1
      %s172 = scalar_select %p169, %s170, %s171
      %p175 = pneg %p169
      %p176 = scmp.eq.s32.totalorder %s15, 1
      %p177 = por %p175, %p176
      %p178 = scmp.ne.s32.totalorder %s170, %s173
      %p179 = scmp.eq.s32.totalorder %s15, 0
      %p180 = por %p178, %p179
      %p181 = scmp.ne.s32.totalorder %s170, %s173
      %p182 = scmp.eq.s32.totalorder %s20, 1
      %p183 = por %p181, %p182
      %p184 = scmp.ne.s32.totalorder %s173, %s174
      %p185 = scmp.eq.s32.totalorder %s20, 0
      %p186 = por %p184, %p185
      %p187 = scmp.ne.s32.totalorder %s173, %s174
      %p188 = scmp.eq.s32.totalorder %s21, 1
      %p189 = por %p187, %p188
      %p191 = scmp.ne.s32.totalorder %s174, %s190
      %p192 = scmp.eq.s32.totalorder %s21, 0
      %p193 = por %p191, %p192
      %p194 = scmp.le.s32.totalorder 1, %s15
      %p195 = scmp.lt.s32.totalorder %s15, 3
      %p196 = pnand %p194, %p195
      %p197 = pneg %p196
      // Predicated region
      $region9: #{tpu_custom_call.1} parent=5 // pred_check
        _
      $region10: #{tpu_custom_call.1} parent=5 // pred_check_branch
        %199 = sbr.rel (%p196) target = $region12
      $region11: #{tpu_custom_call.1} parent=5 // pred_region
        %s200 = ssub.s32 %s15, 1
        // Predicated region
        $region13: #{tpu_custom_call.1} parent=11 // pred_check
          %p201 = pneg %p74
        $region14: #{tpu_custom_call.1} parent=11 // pred_check_branch
          %203 = sbr.rel (%p201) target = $region16
        $region15: #{tpu_custom_call.1} parent=11 // pred_region
          _
        $region16: #{tpu_custom_call.1} parent=11 // pred_fallthru
          _
        // Predicated region
        $region17: #{tpu_custom_call.1} parent=11 // pred_check
          %p204 = pneg %p95
        $region18: #{tpu_custom_call.1} parent=11 // pred_check_branch
          %206 = sbr.rel (%p204) target = $region20
        $region19: #{tpu_custom_call.1} parent=11 // pred_region
          _
        $region20: #{tpu_custom_call.1} parent=11 // pred_fallthru
          _
        // Predicated region
        $region21: #{tpu_custom_call.1} parent=11 // pred_check
          %p207 = pneg %p116
        $region22: #{tpu_custom_call.1} parent=11 // pred_check_branch
          %209 = sbr.rel (%p207) target = $region24
        $region23: #{tpu_custom_call.1} parent=11 // pred_region
          _
        $region24: #{tpu_custom_call.1} parent=11 // pred_fallthru
          _
        // Predicated region
        $region25: #{tpu_custom_call.1} parent=11 // pred_check
          %p210 = pneg %p137
        $region26: #{tpu_custom_call.1} parent=11 // pred_check_branch
          %212 = sbr.rel (%p210) target = $region28
        $region27: #{tpu_custom_call.1} parent=11 // pred_region
          _
        $region28: #{tpu_custom_call.1} parent=11 // pred_fallthru
          _
        // Predicated region
        $region29: #{tpu_custom_call.1} parent=11 // pred_check
          %p213 = pneg %p158
        $region30: #{tpu_custom_call.1} parent=11 // pred_check_branch
          %215 = sbr.rel (%p213) target = $region32
        $region31: #{tpu_custom_call.1} parent=11 // pred_region
          _
        $region32: #{tpu_custom_call.1} parent=11 // pred_fallthru
          _
      $region12: #{tpu_custom_call.1} parent=5 // pred_fallthru
        _
      %p216 = scmp.lt.s32.totalorder %s15, 2
      // Predicated region
      $region33: #{tpu_custom_call.1} parent=5 // pred_check
        %p217 = pneg %p216
      $region34: #{tpu_custom_call.1} parent=5 // pred_check_branch
        %219 = sbr.rel (%p217) target = $region36
      $region35: #{tpu_custom_call.1} parent=5 // pred_region
        // Predicated region
        $region37: #{tpu_custom_call.1} parent=35 // pred_check
          %p220 = pneg %p47
        $region38: #{tpu_custom_call.1} parent=35 // pred_check_branch
          %222 = sbr.rel (%p220) target = $region40
        $region39: #{tpu_custom_call.1} parent=35 // pred_region
          %p223 = scmp.lt.s32.totalorder %s22, 1
          %s224 = scalar_select %p223, %s22, 1
          %s225 = smul.addr %s224, 8
          %s226 = scalar_lea.vmem %s0, %s225
        $region40: #{tpu_custom_call.1} parent=35 // pred_fallthru
          _
      $region36: #{tpu_custom_call.1} parent=5 // pred_fallthru
        _
      %p227 = scmp.le.s32.totalorder 1, %s15
      %p228 = scmp.lt.s32.totalorder %s15, 3
      %p229 = pnand %p227, %p228
      %p230 = pneg %p229
      // Predicated region
      $region41: #{tpu_custom_call.1} parent=5 // pred_check
        _
      $region42: #{tpu_custom_call.1} parent=5 // pred_check_branch
        %232 = sbr.rel (%p229) target = $region44
      $region43: #{tpu_custom_call.1} parent=5 // pred_region
        %s233 = ssub.s32 %s15, 1
        %p234 = scmp.lt.s32.totalorder %s24, 1
        %s235 = scalar_select %p234, %s24, 1
        %s236 = smul.addr %s235, 8
        %s237 = scalar_lea.vmem %s0, %s236
        %p238 = pneg %p53
        %p239 = pneg %p50
        %p240 = pneg %p74
        %p241 = pneg %p71
        %p242 = pneg %p95
        %p243 = pneg %p92
        %p244 = pneg %p116
        %p245 = pneg %p113
        %p246 = pneg %p137
        %p247 = pneg %p134
        %p248 = pneg %p158
        %p249 = pneg %p155
        %p250 = pneg %p186
        %p251 = pneg %p183
        %s252 = sand.u32 %s173, 1
        %s253 = scalar_lea.sflag [#allocation5], %s252
        %s254 = sand.u32 %s173, 1
        %s255 = smul.addr %s254, 8
        %s256 = scalar_lea.vmem [#allocation4], %s255
        %p257 = scmp.lt.s32.totalorder %s24, 1
        %s258 = scalar_select %p257, %s24, 1
        %s259 = smul.addr %s258, 8
        %s260 = scalar_lea.vmem %s0, %s259
        %p261 = scmp.eq.s32.totalorder %s25, 0
        // Predicated region
        $region45: #{tpu_custom_call.1} parent=43 // pred_check
          %p262 = pneg %p261
        $region46: #{tpu_custom_call.1} parent=43 // pred_check_branch
          %264 = sbr.rel (%p262) target = $region48
        $region47: #{tpu_custom_call.1} parent=43 // pred_region
          %v265 = vld [vmem:[%s260] sm:$0xff]
          %v266 = vld [vmem:[%s2] sm:$0xff]
          %v267 = vld [vmem:[%s2 + $0x8] sm:$0xff]
          %v268 = vld [vmem:[%s2 + $0x10] sm:$0xff]
          %v269 = vld [vmem:[%s2 + $0x18] sm:$0xff]
          %v270 = vld [vmem:[%s2 + $0x20] sm:$0xff]
          %v271 = vld [vmem:[%s2 + $0x28] sm:$0xff]
          %v272 = vld [vmem:[%s2 + $0x30] sm:$0xff]
          %v273 = vld [vmem:[%s2 + $0x38] sm:$0xff]
          %v274 = vld [vmem:[%s2 + $0x40] sm:$0xff]
          %v275 = vld [vmem:[%s2 + $0x48] sm:$0xff]
          %v276 = vld [vmem:[%s2 + $0x50] sm:$0xff]
          %v277 = vld [vmem:[%s2 + $0x58] sm:$0xff]
          %v278 = vld [vmem:[%s2 + $0x60] sm:$0xff]
          %v279 = vld [vmem:[%s2 + $0x68] sm:$0xff]
          %v280 = vld [vmem:[%s2 + $0x70] sm:$0xff]
          %v281 = vld [vmem:[%s2 + $0x78] sm:$0xff]
          %282 = vmatprep.subr.mxu0 0.0
          %283 = vmatpush1.msra.mxu0 %v266
          %284 = vmatprep.subr.mxu0 0.0
          %285 = vmatpush1.msra.mxu0 %v267
          %286 = vmatprep.subr.mxu0 0.0
          %287 = vmatpush1.msra.mxu0 %v268
          %288 = vmatprep.subr.mxu0 0.0
          %289 = vmatpush1.msra.mxu0 %v269
          %290 = vmatprep.subr.mxu0 0.0
          %291 = vmatpush1.msra.mxu0 %v270
          %292 = vmatprep.subr.mxu0 0.0
          %293 = vmatpush1.msra.mxu0 %v271
          %294 = vmatprep.subr.mxu0 0.0
          %295 = vmatpush1.msra.mxu0 %v272
          %296 = vmatprep.subr.mxu0 0.0
          %297 = vmatpush1.msra.mxu0 %v273
          %298 = vmatprep.subr.mxu0 0.0
          %299 = vmatpush1.msra.mxu0 %v274
          %300 = vmatprep.subr.mxu0 0.0
          %301 = vmatpush1.msra.mxu0 %v275
          %302 = vmatprep.subr.mxu0 0.0
          %303 = vmatpush1.msra.mxu0 %v276
          %304 = vmatprep.subr.mxu0 0.0
          %305 = vmatpush1.msra.mxu0 %v277
          %306 = vmatprep.subr.mxu0 0.0
          %307 = vmatpush1.msra.mxu0 %v278
          %308 = vmatprep.subr.mxu0 0.0
          %309 = vmatpush1.msra.mxu0 %v279
          %310 = vmatprep.subr.mxu0 0.0
          %311 = vmatpush1.msra.mxu0 %v280
          %312 = vmatprep.subr.mxu0 0.0
          %313 = vmatpush1.msra.mxu0 %v281
          %314 = vmatprep.subr.mxu0 0.0
          %315 = vmatpush1.msra.mxu0 0.0
          %316 = vmatprep.subr.mxu0 0.0
          %317 = vmatpush1.msra.mxu0 0.0
          %318 = vmatprep.subr.mxu0 0.0
          %319 = vmatpush1.msra.mxu0 0.0
          %320 = vmatprep.subr.mxu0 0.0
          %321 = vmatpush1.msra.mxu0 0.0
          %322 = vmatprep.subr.mxu0 0.0
          %323 = vmatpush1.msra.mxu0 0.0
          %324 = vmatprep.subr.mxu0 0.0
          %325 = vmatpush1.msra.mxu0 0.0
          %326 = vmatprep.subr.mxu0 0.0
          %327 = vmatpush1.msra.mxu0 0.0
          %328 = vmatprep.subr.mxu0 0.0
          %329 = vmatpush1.msra.mxu0 0.0
          %330 = vmatprep.subr.mxu0 0.0
          %331 = vmatpush1.msra.mxu0 0.0
          %332 = vmatprep.subr.mxu0 0.0
          %333 = vmatpush1.msra.mxu0 0.0
          %334 = vmatprep.subr.mxu0 0.0
          %335 = vmatpush1.msra.mxu0 0.0
          %336 = vmatprep.subr.mxu0 0.0
          %337 = vmatpush1.msra.mxu0 0.0
          %338 = vmatprep.subr.mxu0 0.0
          %339 = vmatpush1.msra.mxu0 0.0
          %340 = vmatprep.subr.mxu0 0.0
          %341 = vmatpush1.msra.mxu0 0.0
          %342 = vmatprep.subr.mxu0 0.0
          %343 = vmatpush1.msra.mxu0 0.0
          %344 = vmatprep.subr.mxu0 0.0
          %345 = vmatpush1.msra.mxu0 0.0
          %346 = vmatprep.mubr.f32.mxu0 0.0
          %347 = vmatmul.mubr.f32.gmra.mrb[0].mxu0 %v265
          %v348 = vpop.f32.mrb[0].mxu0
          %v349 = vadd.f32 0.0, %v348
          %v350 = vpop.f32.mrb[0].mxu0
          %351 = vdwg.mxu0
          %v352 = vld [vmem:[%s3] sm:$0xff]
          %v353 = vld [vmem:[%s3 + $0x8] sm:$0xff]
          %v354 = vld [vmem:[%s3 + $0x10] sm:$0xff]
          %v355 = vld [vmem:[%s3 + $0x18] sm:$0xff]
          %v356 = vld [vmem:[%s3 + $0x20] sm:$0xff]
          %v357 = vld [vmem:[%s3 + $0x28] sm:$0xff]
          %v358 = vld [vmem:[%s3 + $0x30] sm:$0xff]
          %v359 = vld [vmem:[%s3 + $0x38] sm:$0xff]
          %v360 = vld [vmem:[%s3 + $0x40] sm:$0xff]
          %v361 = vld [vmem:[%s3 + $0x48] sm:$0xff]
          %v362 = vld [vmem:[%s3 + $0x50] sm:$0xff]
          %v363 = vld [vmem:[%s3 + $0x58] sm:$0xff]
          %v364 = vld [vmem:[%s3 + $0x60] sm:$0xff]
          %v365 = vld [vmem:[%s3 + $0x68] sm:$0xff]
          %v366 = vld [vmem:[%s3 + $0x70] sm:$0xff]
          %v367 = vld [vmem:[%s3 + $0x78] sm:$0xff]
          %368 = vmatprep.subr.mxu0 0.0
          %369 = vmatpush1.msra.mxu0 %v352
          %370 = vmatprep.subr.mxu0 0.0
          %371 = vmatpush1.msra.mxu0 %v353
          %372 = vmatprep.subr.mxu0 0.0
          %373 = vmatpush1.msra.mxu0 %v354
          %374 = vmatprep.subr.mxu0 0.0
          %375 = vmatpush1.msra.mxu0 %v355
          %376 = vmatprep.subr.mxu0 0.0
          %377 = vmatpush1.msra.mxu0 %v356
          %378 = vmatprep.subr.mxu0 0.0
          %379 = vmatpush1.msra.mxu0 %v357
          %380 = vmatprep.subr.mxu0 0.0
          %381 = vmatpush1.msra.mxu0 %v358
          %382 = vmatprep.subr.mxu0 0.0
          %383 = vmatpush1.msra.mxu0 %v359
          %384 = vmatprep.subr.mxu0 0.0
          %385 = vmatpush1.msra.mxu0 %v360
          %386 = vmatprep.subr.mxu0 0.0
          %387 = vmatpush1.msra.mxu0 %v361
          %388 = vmatprep.subr.mxu0 0.0
          %389 = vmatpush1.msra.mxu0 %v362
          %390 = vmatprep.subr.mxu0 0.0
          %391 = vmatpush1.msra.mxu0 %v363
          %392 = vmatprep.subr.mxu0 0.0
          %393 = vmatpush1.msra.mxu0 %v364
          %394 = vmatprep.subr.mxu0 0.0
          %395 = vmatpush1.msra.mxu0 %v365
          %396 = vmatprep.subr.mxu0 0.0
          %397 = vmatpush1.msra.mxu0 %v366
          %398 = vmatprep.subr.mxu0 0.0
          %399 = vmatpush1.msra.mxu0 %v367
          %400 = vmatprep.subr.mxu0 0.0
          %401 = vmatpush1.msra.mxu0 0.0
          %402 = vmatprep.subr.mxu0 0.0
          %403 = vmatpush1.msra.mxu0 0.0
          %404 = vmatprep.subr.mxu0 0.0
          %405 = vmatpush1.msra.mxu0 0.0
          %406 = vmatprep.subr.mxu0 0.0
          %407 = vmatpush1.msra.mxu0 0.0
          %408 = vmatprep.subr.mxu0 0.0
          %409 = vmatpush1.msra.mxu0 0.0
          %410 = vmatprep.subr.mxu0 0.0
          %411 = vmatpush1.msra.mxu0 0.0
          %412 = vmatprep.subr.mxu0 0.0
          %413 = vmatpush1.msra.mxu0 0.0
          %414 = vmatprep.subr.mxu0 0.0
          %415 = vmatpush1.msra.mxu0 0.0
          %416 = vmatprep.subr.mxu0 0.0
          %417 = vmatpush1.msra.mxu0 0.0
          %418 = vmatprep.subr.mxu0 0.0
          %419 = vmatpush1.msra.mxu0 0.0
          %420 = vmatprep.subr.mxu0 0.0
          %421 = vmatpush1.msra.mxu0 0.0
          %422 = vmatprep.subr.mxu0 0.0
          %423 = vmatpush1.msra.mxu0 0.0
          %424 = vmatprep.subr.mxu0 0.0
          %425 = vmatpush1.msra.mxu0 0.0
          %426 = vmatprep.subr.mxu0 0.0
          %427 = vmatpush1.msra.mxu0 0.0
          %428 = vmatprep.subr.mxu0 0.0
          %429 = vmatpush1.msra.mxu0 0.0
          %430 = vmatprep.subr.mxu0 0.0
          %431 = vmatpush1.msra.mxu0 0.0
          %432 = vmatprep.mubr.f32.mxu0 0.0
          %433 = vmatmul.mubr.f32.gmra.mrb[0].mxu0 %v265
          %v434 = vpop.f32.mrb[0].mxu0
          %v435 = vadd.f32 0.0, %v434
          %v436 = vpop.f32.mrb[0].mxu0
          %437 = vdwg.mxu0
          %439 = vrot.lane.b32.xlu0 %v349, 112
          %v440 = vpop.permute.xlu0 %439
          %v442 = vcombine.high %v349, 0.0
          %v444 = vunpack.c.l.s4 1983009808
          %v445 = vunpack.c.0.s8 %v444
          %v446 = vlaneseq
          %v447 = vshrl.u32 %v446, 7
          %v448 = vsub.s32 %v445, %v447
          %v449 = vrot.slane %v349, %v448
          %v451 = vunpack.c.l.s4 1983009808
          %v452 = vunpack.c.0.s8 %v451
          %v453 = vlaneseq
          %v454 = vshrl.u32 %v453, 7
          %v455 = vsub.s32 %v452, %v454
          %v456 = vrot.slane %v442, %v455
          %v457 = vcombine.high %v440, 0.0
          %v459 = vunpack.c.l.s4 1983009808
          %v460 = vunpack.c.0.s8 %v459
          %v461 = vlaneseq
          %v462 = vshrl.u32 %v461, 7
          %v463 = vsub.s32 %v460, %v462
          %v464 = vrot.slane %v440, %v463
          %v466 = vunpack.c.l.s4 1983009808
          %v467 = vunpack.c.0.s8 %v466
          %v468 = vlaneseq
          %v469 = vshrl.u32 %v468, 7
          %v470 = vsub.s32 %v467, %v469
          %v471 = vrot.slane %v457, %v470
          %v472 = vcombine.low %v449, %v464
          %v473 = vcombine.high %v449, %v464
          %v475 = vunpack.c.l.s4 1934713408
          %v476 = vunpack.c.0.s8 %v475
          %v477 = vlaneseq
          %v478 = vshrl.u32 %v477, 7
          %v479 = vsub.s32 %v476, %v478
          %v480 = vrot.slane %v472, %v479
          %v482 = vunpack.c.l.s4 1934713408
          %v483 = vunpack.c.0.s8 %v482
          %v484 = vlaneseq
          %v485 = vshrl.u32 %v484, 7
          %v486 = vsub.s32 %v483, %v485
          %v487 = vrot.slane %v473, %v486
          %v488 = vcombine.low %v456, %v471
          %v489 = vcombine.high %v456, %v471
          %v491 = vunpack.c.l.s4 1934713408
          %v492 = vunpack.c.0.s8 %v491
          %v493 = vlaneseq
          %v494 = vshrl.u32 %v493, 7
          %v495 = vsub.s32 %v492, %v494
          %v496 = vrot.slane %v488, %v495
          %v498 = vunpack.c.l.s4 1934713408
          %v499 = vunpack.c.0.s8 %v498
          %v500 = vlaneseq
          %v501 = vshrl.u32 %v500, 7
          %v502 = vsub.s32 %v499, %v501
          %v503 = vrot.slane %v489, %v502
          %v504 = vcombine.high %v480, 0.0
          %v505 = vcombine.high %v487, 0.0
          %v506 = vcombine.high %v496, 0.0
          %v507 = vcombine.high %v503, 0.0
          %v508 = vcombine.low %v480, %v487
          %v510 = vunpack.c.l.s4 1983009808
          %v511 = vunpack.c.0.s8 %v510
          %v512 = vlaneseq
          %v513 = vshrl.u32 %v512, 7
          %v514 = vsub.s32 %v511, %v513
          %v515 = vrot.slane %v508, %v514
          %v516 = vcombine.low %v504, %v505
          %v518 = vunpack.c.l.s4 1983009808
          %v519 = vunpack.c.0.s8 %v518
          %v520 = vlaneseq
          %v521 = vshrl.u32 %v520, 7
          %v522 = vsub.s32 %v519, %v521
          %v523 = vrot.slane %v516, %v522
          %v524 = vcombine.low %v496, %v503
          %v526 = vunpack.c.l.s4 1983009808
          %v527 = vunpack.c.0.s8 %v526
          %v528 = vlaneseq
          %v529 = vshrl.u32 %v528, 7
          %v530 = vsub.s32 %v527, %v529
          %v531 = vrot.slane %v524, %v530
          %v532 = vcombine.low %v506, %v507
          %v534 = vunpack.c.l.s4 1983009808
          %v535 = vunpack.c.0.s8 %v534
          %v536 = vlaneseq
          %v537 = vshrl.u32 %v536, 7
          %v538 = vsub.s32 %v535, %v537
          %v539 = vrot.slane %v532, %v538
          %v540 = vcombine.low %v515, %v523
          %v542 = vunpack.c.l.s4 1934713408
          %v543 = vunpack.c.0.s8 %v542
          %v544 = vlaneseq
          %v545 = vshrl.u32 %v544, 7
          %v546 = vsub.s32 %v543, %v545
          %v547 = vrot.slane %v540, %v546
          %v548 = vcombine.low %v531, %v539
          %v550 = vunpack.c.l.s4 1934713408
          %v551 = vunpack.c.0.s8 %v550
          %v552 = vlaneseq
          %v553 = vshrl.u32 %v552, 7
          %v554 = vsub.s32 %v551, %v553
          %v555 = vrot.slane %v548, %v554
          %v556 = vcombine.low %v547, %v555
          %v557 = vcombine.high %v547, %v555
          %vm558 = vcmask 130048
          %559 = vst.msk [vmem:[#allocation2] sm:$0xff] %vm558, %v556
          %560 = vst.msk [vmem:[#allocation2 + $0x8] sm:$0xff] %vm558, %v557
          %562 = vrot.lane.b32.xlu0 %v435, 112
          %v563 = vpop.permute.xlu0 %562
          %v565 = vcombine.high %v435, 0.0
          %v567 = vunpack.c.l.s4 1983009808
          %v568 = vunpack.c.0.s8 %v567
          %v569 = vlaneseq
          %v570 = vshrl.u32 %v569, 7
          %v571 = vsub.s32 %v568, %v570
          %v572 = vrot.slane %v435, %v571
          %v574 = vunpack.c.l.s4 1983009808
          %v575 = vunpack.c.0.s8 %v574
          %v576 = vlaneseq
          %v577 = vshrl.u32 %v576, 7
          %v578 = vsub.s32 %v575, %v577
          %v579 = vrot.slane %v565, %v578
          %v580 = vcombine.high %v563, 0.0
          %v582 = vunpack.c.l.s4 1983009808
          %v583 = vunpack.c.0.s8 %v582
          %v584 = vlaneseq
          %v585 = vshrl.u32 %v584, 7
          %v586 = vsub.s32 %v583, %v585
          %v587 = vrot.slane %v563, %v586
          %v589 = vunpack.c.l.s4 1983009808
          %v590 = vunpack.c.0.s8 %v589
          %v591 = vlaneseq
          %v592 = vshrl.u32 %v591, 7
          %v593 = vsub.s32 %v590, %v592
          %v594 = vrot.slane %v580, %v593
          %v595 = vcombine.low %v572, %v587
          %v596 = vcombine.high %v572, %v587
          %v598 = vunpack.c.l.s4 1934713408
          %v599 = vunpack.c.0.s8 %v598
          %v600 = vlaneseq
          %v601 = vshrl.u32 %v600, 7
          %v602 = vsub.s32 %v599, %v601
          %v603 = vrot.slane %v595, %v602
          %v605 = vunpack.c.l.s4 1934713408
          %v606 = vunpack.c.0.s8 %v605
          %v607 = vlaneseq
          %v608 = vshrl.u32 %v607, 7
          %v609 = vsub.s32 %v606, %v608
          %v610 = vrot.slane %v596, %v609
          %v611 = vcombine.low %v579, %v594
          %v612 = vcombine.high %v579, %v594
          %v614 = vunpack.c.l.s4 1934713408
          %v615 = vunpack.c.0.s8 %v614
          %v616 = vlaneseq
          %v617 = vshrl.u32 %v616, 7
          %v618 = vsub.s32 %v615, %v617
          %v619 = vrot.slane %v611, %v618
          %v621 = vunpack.c.l.s4 1934713408
          %v622 = vunpack.c.0.s8 %v621
          %v623 = vlaneseq
          %v624 = vshrl.u32 %v623, 7
          %v625 = vsub.s32 %v622, %v624
          %v626 = vrot.slane %v612, %v625
          %v627 = vcombine.high %v603, 0.0
          %v628 = vcombine.high %v610, 0.0
          %v629 = vcombine.high %v619, 0.0
          %v630 = vcombine.high %v626, 0.0
          %v631 = vcombine.low %v603, %v610
          %v633 = vunpack.c.l.s4 1983009808
          %v634 = vunpack.c.0.s8 %v633
          %v635 = vlaneseq
          %v636 = vshrl.u32 %v635, 7
          %v637 = vsub.s32 %v634, %v636
          %v638 = vrot.slane %v631, %v637
          %v639 = vcombine.low %v627, %v628
          %v641 = vunpack.c.l.s4 1983009808
          %v642 = vunpack.c.0.s8 %v641
          %v643 = vlaneseq
          %v644 = vshrl.u32 %v643, 7
          %v645 = vsub.s32 %v642, %v644
          %v646 = vrot.slane %v639, %v645
          %v647 = vcombine.low %v619, %v626
          %v649 = vunpack.c.l.s4 1983009808
          %v650 = vunpack.c.0.s8 %v649
          %v651 = vlaneseq
          %v652 = vshrl.u32 %v651, 7
          %v653 = vsub.s32 %v650, %v652
          %v654 = vrot.slane %v647, %v653
          %v655 = vcombine.low %v629, %v630
          %v657 = vunpack.c.l.s4 1983009808
          %v658 = vunpack.c.0.s8 %v657
          %v659 = vlaneseq
          %v660 = vshrl.u32 %v659, 7
          %v661 = vsub.s32 %v658, %v660
          %v662 = vrot.slane %v655, %v661
          %v663 = vcombine.low %v638, %v646
          %v665 = vunpack.c.l.s4 1934713408
          %v666 = vunpack.c.0.s8 %v665
          %v667 = vlaneseq
          %v668 = vshrl.u32 %v667, 7
          %v669 = vsub.s32 %v666, %v668
          %v670 = vrot.slane %v663, %v669
          %v671 = vcombine.low %v654, %v662
          %v673 = vunpack.c.l.s4 1934713408
          %v674 = vunpack.c.0.s8 %v673
          %v675 = vlaneseq
          %v676 = vshrl.u32 %v675, 7
          %v677 = vsub.s32 %v674, %v676
          %v678 = vrot.slane %v671, %v677
          %v679 = vcombine.low %v670, %v678
          %v680 = vcombine.high %v670, %v678
          %681 = vst.msk [vmem:[#allocation3] sm:$0xff] %vm558, %v679
          %682 = vst.msk [vmem:[#allocation3 + $0x8] sm:$0xff] %vm558, %v680
        $region48: #{tpu_custom_call.1} parent=43 // pred_fallthru
          _
        %s683 = smul.u32 %s25, 8
        %s684 = scalar_lea.vmem %s260, %s683
        %v685 = vld [vmem:[%s684] sm:$0xff]
        %v686 = vld [vmem:[%s1] sm:$0xff]
        %v687 = vld [vmem:[%s1 + $0x8] sm:$0xff]
        %v688 = vld [vmem:[%s1 + $0x10] sm:$0xff]
        %v689 = vld [vmem:[%s1 + $0x18] sm:$0xff]
        %v690 = vld [vmem:[%s1 + $0x20] sm:$0xff]
        %v691 = vld [vmem:[%s1 + $0x28] sm:$0xff]
        %v692 = vld [vmem:[%s1 + $0x30] sm:$0xff]
        %v693 = vld [vmem:[%s1 + $0x38] sm:$0xff]
        %v694 = vld [vmem:[%s1 + $0x40] sm:$0xff]
        %v695 = vld [vmem:[%s1 + $0x48] sm:$0xff]
        %v696 = vld [vmem:[%s1 + $0x50] sm:$0xff]
        %v697 = vld [vmem:[%s1 + $0x58] sm:$0xff]
        %v698 = vld [vmem:[%s1 + $0x60] sm:$0xff]
        %v699 = vld [vmem:[%s1 + $0x68] sm:$0xff]
        %v700 = vld [vmem:[%s1 + $0x70] sm:$0xff]
        %v701 = vld [vmem:[%s1 + $0x78] sm:$0xff]
        %702 = vmatprep.subr.mxu0 0.0
        %703 = vmatpush1.msra.mxu0 %v686
        %704 = vmatprep.subr.mxu0 0.0
        %705 = vmatpush1.msra.mxu0 %v687
        %706 = vmatprep.subr.mxu0 0.0
        %707 = vmatpush1.msra.mxu0 %v688
        %708 = vmatprep.subr.mxu0 0.0
        %709 = vmatpush1.msra.mxu0 %v689
        %710 = vmatprep.subr.mxu0 0.0
        %711 = vmatpush1.msra.mxu0 %v690
        %712 = vmatprep.subr.mxu0 0.0
        %713 = vmatpush1.msra.mxu0 %v691
        %714 = vmatprep.subr.mxu0 0.0
        %715 = vmatpush1.msra.mxu0 %v692
        %716 = vmatprep.subr.mxu0 0.0
        %717 = vmatpush1.msra.mxu0 %v693
        %718 = vmatprep.subr.mxu0 0.0
        %719 = vmatpush1.msra.mxu0 %v694
        %720 = vmatprep.subr.mxu0 0.0
        %721 = vmatpush1.msra.mxu0 %v695
        %722 = vmatprep.subr.mxu0 0.0
        %723 = vmatpush1.msra.mxu0 %v696
        %724 = vmatprep.subr.mxu0 0.0
        %725 = vmatpush1.msra.mxu0 %v697
        %726 = vmatprep.subr.mxu0 0.0
        %727 = vmatpush1.msra.mxu0 %v698
        %728 = vmatprep.subr.mxu0 0.0
        %729 = vmatpush1.msra.mxu0 %v699
        %730 = vmatprep.subr.mxu0 0.0
        %731 = vmatpush1.msra.mxu0 %v700
        %732 = vmatprep.subr.mxu0 0.0
        %733 = vmatpush1.msra.mxu0 %v701
        %734 = vmatprep.subr.mxu0 0.0
        %735 = vmatpush1.msra.mxu0 0.0
        %736 = vmatprep.subr.mxu0 0.0
        %737 = vmatpush1.msra.mxu0 0.0
        %738 = vmatprep.subr.mxu0 0.0
        %739 = vmatpush1.msra.mxu0 0.0
        %740 = vmatprep.subr.mxu0 0.0
        %741 = vmatpush1.msra.mxu0 0.0
        %742 = vmatprep.subr.mxu0 0.0
        %743 = vmatpush1.msra.mxu0 0.0
        %744 = vmatprep.subr.mxu0 0.0
        %745 = vmatpush1.msra.mxu0 0.0
        %746 = vmatprep.subr.mxu0 0.0
        %747 = vmatpush1.msra.mxu0 0.0
        %748 = vmatprep.subr.mxu0 0.0
        %749 = vmatpush1.msra.mxu0 0.0
        %750 = vmatprep.subr.mxu0 0.0
        %751 = vmatpush1.msra.mxu0 0.0
        %752 = vmatprep.subr.mxu0 0.0
        %753 = vmatpush1.msra.mxu0 0.0
        %754 = vmatprep.subr.mxu0 0.0
        %755 = vmatpush1.msra.mxu0 0.0
        %756 = vmatprep.subr.mxu0 0.0
        %757 = vmatpush1.msra.mxu0 0.0
        %758 = vmatprep.subr.mxu0 0.0
        %759 = vmatpush1.msra.mxu0 0.0
        %760 = vmatprep.subr.mxu0 0.0
        %761 = vmatpush1.msra.mxu0 0.0
        %762 = vmatprep.subr.mxu0 0.0
        %763 = vmatpush1.msra.mxu0 0.0
        %764 = vmatprep.subr.mxu0 0.0
        %765 = vmatpush1.msra.mxu0 0.0
        %766 = vmatprep.mubr.f32.mxu0 0.0
        %767 = vmatmul.mubr.f32.gmra.mrb[0].mxu0 %v685
        %v768 = vpop.f32.mrb[0].mxu0
        %v769 = vadd.f32 0.0, %v768
        %v770 = vpop.f32.mrb[0].mxu0
        %771 = vdwg.mxu0
        %773 = vrot.lane.b32.xlu0 %v769, 112
        %v774 = vpop.permute.xlu0 %773
        %v776 = vcombine.high %v769, 0.0
        %v778 = vunpack.c.l.s4 1983009808
        %v779 = vunpack.c.0.s8 %v778
        %v780 = vlaneseq
        %v781 = vshrl.u32 %v780, 7
        %v782 = vsub.s32 %v779, %v781
        %v783 = vrot.slane %v769, %v782
        %v785 = vunpack.c.l.s4 1983009808
        %v786 = vunpack.c.0.s8 %v785
        %v787 = vlaneseq
        %v788 = vshrl.u32 %v787, 7
        %v789 = vsub.s32 %v786, %v788
        %v790 = vrot.slane %v776, %v789
        %v791 = vcombine.high %v774, 0.0
        %v793 = vunpack.c.l.s4 1983009808
        %v794 = vunpack.c.0.s8 %v793
        %v795 = vlaneseq
        %v796 = vshrl.u32 %v795, 7
        %v797 = vsub.s32 %v794, %v796
        %v798 = vrot.slane %v774, %v797
        %v800 = vunpack.c.l.s4 1983009808
        %v801 = vunpack.c.0.s8 %v800
        %v802 = vlaneseq
        %v803 = vshrl.u32 %v802, 7
        %v804 = vsub.s32 %v801, %v803
        %v805 = vrot.slane %v791, %v804
        %v806 = vcombine.low %v783, %v798
        %v807 = vcombine.high %v783, %v798
        %v809 = vunpack.c.l.s4 1934713408
        %v810 = vunpack.c.0.s8 %v809
        %v811 = vlaneseq
        %v812 = vshrl.u32 %v811, 7
        %v813 = vsub.s32 %v810, %v812
        %v814 = vrot.slane %v806, %v813
        %v816 = vunpack.c.l.s4 1934713408
        %v817 = vunpack.c.0.s8 %v816
        %v818 = vlaneseq
        %v819 = vshrl.u32 %v818, 7
        %v820 = vsub.s32 %v817, %v819
        %v821 = vrot.slane %v807, %v820
        %v822 = vcombine.low %v790, %v805
        %v823 = vcombine.high %v790, %v805
        %v825 = vunpack.c.l.s4 1934713408
        %v826 = vunpack.c.0.s8 %v825
        %v827 = vlaneseq
        %v828 = vshrl.u32 %v827, 7
        %v829 = vsub.s32 %v826, %v828
        %v830 = vrot.slane %v822, %v829
        %v832 = vunpack.c.l.s4 1934713408
        %v833 = vunpack.c.0.s8 %v832
        %v834 = vlaneseq
        %v835 = vshrl.u32 %v834, 7
        %v836 = vsub.s32 %v833, %v835
        %v837 = vrot.slane %v823, %v836
        %v838 = vcombine.high %v814, 0.0
        %v839 = vcombine.high %v821, 0.0
        %v840 = vcombine.high %v830, 0.0
        %v841 = vcombine.high %v837, 0.0
        %v842 = vcombine.low %v814, %v821
        %v844 = vunpack.c.l.s4 1983009808
        %v845 = vunpack.c.0.s8 %v844
        %v846 = vlaneseq
        %v847 = vshrl.u32 %v846, 7
        %v848 = vsub.s32 %v845, %v847
        %v849 = vrot.slane %v842, %v848
        %v850 = vcombine.low %v838, %v839
        %v852 = vunpack.c.l.s4 1983009808
        %v853 = vunpack.c.0.s8 %v852
        %v854 = vlaneseq
        %v855 = vshrl.u32 %v854, 7
        %v856 = vsub.s32 %v853, %v855
        %v857 = vrot.slane %v850, %v856
        %v858 = vcombine.low %v830, %v837
        %v860 = vunpack.c.l.s4 1983009808
        %v861 = vunpack.c.0.s8 %v860
        %v862 = vlaneseq
        %v863 = vshrl.u32 %v862, 7
        %v864 = vsub.s32 %v861, %v863
        %v865 = vrot.slane %v858, %v864
        %v866 = vcombine.low %v840, %v841
        %v868 = vunpack.c.l.s4 1983009808
        %v869 = vunpack.c.0.s8 %v868
        %v870 = vlaneseq
        %v871 = vshrl.u32 %v870, 7
        %v872 = vsub.s32 %v869, %v871
        %v873 = vrot.slane %v866, %v872
        %v874 = vcombine.low %v849, %v857
        %v876 = vunpack.c.l.s4 1934713408
        %v877 = vunpack.c.0.s8 %v876
        %v878 = vlaneseq
        %v879 = vshrl.u32 %v878, 7
        %v880 = vsub.s32 %v877, %v879
        %v881 = vrot.slane %v874, %v880
        %v882 = vcombine.low %v865, %v873
        %v884 = vunpack.c.l.s4 1934713408
        %v885 = vunpack.c.0.s8 %v884
        %v886 = vlaneseq
        %v887 = vshrl.u32 %v886, 7
        %v888 = vsub.s32 %v885, %v887
        %v889 = vrot.slane %v882, %v888
        %v890 = vcombine.low %v881, %v889
        %v891 = vcombine.high %v881, %v889
        %v892 = vld [vmem:[#allocation2] sm:$0xff]
        %v893 = vld [vmem:[#allocation2 + $0x8] sm:$0xff]
        %v894 = vld [vmem:[#allocation3] sm:$0xff]
        %v895 = vld [vmem:[#allocation3 + $0x8] sm:$0xff]
        %vm896 = vcmask 130048
        %v898 = vsel %vm896, %v890, 0
        %v901 = vsel %vm896, %v892, 0
        %903 = vmatprep.subr.mxu0 0.0
        %904 = vmatpush1.xpose.msra.mxu0 %v901
        %905 = vmatprep.subr.mxu0 0.0
        %906 = vmatpush1.xpose.msra.mxu0 0.0
        %907 = vmatprep.subr.mxu0 0.0
        %908 = vmatpush1.xpose.msra.mxu0 0.0
        %909 = vmatprep.subr.mxu0 0.0
        %910 = vmatpush1.xpose.msra.mxu0 0.0
        %911 = vmatprep.subr.mxu0 0.0
        %912 = vmatpush1.xpose.msra.mxu0 0.0
        %913 = vmatprep.subr.mxu0 0.0
        %914 = vmatpush1.xpose.msra.mxu0 0.0
        %915 = vmatprep.subr.mxu0 0.0
        %916 = vmatpush1.xpose.msra.mxu0 0.0
        %917 = vmatprep.subr.mxu0 0.0
        %918 = vmatpush1.xpose.msra.mxu0 0.0
        %919 = vmatprep.subr.mxu0 0.0
        %920 = vmatpush1.xpose.msra.mxu0 0.0
        %921 = vmatprep.subr.mxu0 0.0
        %922 = vmatpush1.xpose.msra.mxu0 0.0
        %923 = vmatprep.subr.mxu0 0.0
        %924 = vmatpush1.xpose.msra.mxu0 0.0
        %925 = vmatprep.subr.mxu0 0.0
        %926 = vmatpush1.xpose.msra.mxu0 0.0
        %927 = vmatprep.subr.mxu0 0.0
        %928 = vmatpush1.xpose.msra.mxu0 0.0
        %929 = vmatprep.subr.mxu0 0.0
        %930 = vmatpush1.xpose.msra.mxu0 0.0
        %931 = vmatprep.subr.mxu0 0.0
        %932 = vmatpush1.xpose.msra.mxu0 0.0
        %933 = vmatprep.subr.mxu0 0.0
        %934 = vmatpush1.xpose.msra.mxu0 0.0
        %935 = vmatprep.subr.mxu0 0.0
        %936 = vmatpush1.xpose.msra.mxu0 0.0
        %937 = vmatprep.subr.mxu0 0.0
        %938 = vmatpush1.xpose.msra.mxu0 0.0
        %939 = vmatprep.subr.mxu0 0.0
        %940 = vmatpush1.xpose.msra.mxu0 0.0
        %941 = vmatprep.subr.mxu0 0.0
        %942 = vmatpush1.xpose.msra.mxu0 0.0
        %943 = vmatprep.subr.mxu0 0.0
        %944 = vmatpush1.xpose.msra.mxu0 0.0
        %945 = vmatprep.subr.mxu0 0.0
        %946 = vmatpush1.xpose.msra.mxu0 0.0
        %947 = vmatprep.subr.mxu0 0.0
        %948 = vmatpush1.xpose.msra.mxu0 0.0
        %949 = vmatprep.subr.mxu0 0.0
        %950 = vmatpush1.xpose.msra.mxu0 0.0
        %951 = vmatprep.subr.mxu0 0.0
        %952 = vmatpush1.xpose.msra.mxu0 0.0
        %953 = vmatprep.subr.mxu0 0.0
        %954 = vmatpush1.xpose.msra.mxu0 0.0
        %955 = vmatprep.subr.mxu0 0.0
        %956 = vmatpush1.xpose.msra.mxu0 0.0
        %957 = vmatprep.subr.mxu0 0.0
        %958 = vmatpush1.xpose.msra.mxu0 0.0
        %959 = vmatprep.subr.mxu0 0.0
        %960 = vmatpush1.xpose.msra.mxu0 0.0
        %961 = vmatprep.subr.mxu0 0.0
        %962 = vmatpush1.xpose.msra.mxu0 0.0
        %963 = vmatprep.subr.mxu0 0.0
        %964 = vmatpush1.xpose.msra.mxu0 0.0
        %965 = vmatprep.subr.mxu0 0.0
        %966 = vmatpush1.xpose.msra.mxu0 0.0
        %967 = vmatprep.mubr.f32.mxu0 0.0
        %968 = vmatmul.mubr.f32.gmra.mrb[0].mxu0 %v898
        %v969 = vpop.f32.mrb[0].mxu0
        %v970 = vadd.f32 0.0, %v969
        %v971 = vpop.f32.mrb[0].mxu0
        %972 = vdwg.mxu0
        %v974 = vsel %vm896, %v891, 0
        %v977 = vsel %vm896, %v893, 0
        %979 = vmatprep.subr.mxu0 0.0
        %980 = vmatpush1.xpose.msra.mxu0 %v977
        %981 = vmatprep.subr.mxu0 0.0
        %982 = vmatpush1.xpose.msra.mxu0 0.0
        %983 = vmatprep.subr.mxu0 0.0
        %984 = vmatpush1.xpose.msra.mxu0 0.0
        %985 = vmatprep.subr.mxu0 0.0
        %986 = vmatpush1.xpose.msra.mxu0 0.0
        %987 = vmatprep.subr.mxu0 0.0
        %988 = vmatpush1.xpose.msra.mxu0 0.0
        %989 = vmatprep.subr.mxu0 0.0
        %990 = vmatpush1.xpose.msra.mxu0 0.0
        %991 = vmatprep.subr.mxu0 0.0
        %992 = vmatpush1.xpose.msra.mxu0 0.0
        %993 = vmatprep.subr.mxu0 0.0
        %994 = vmatpush1.xpose.msra.mxu0 0.0
        %995 = vmatprep.subr.mxu0 0.0
        %996 = vmatpush1.xpose.msra.mxu0 0.0
        %997 = vmatprep.subr.mxu0 0.0
        %998 = vmatpush1.xpose.msra.mxu0 0.0
        %999 = vmatprep.subr.mxu0 0.0
        %1000 = vmatpush1.xpose.msra.mxu0 0.0
        %1001 = vmatprep.subr.mxu0 0.0
        %1002 = vmatpush1.xpose.msra.mxu0 0.0
        %1003 = vmatprep.subr.mxu0 0.0
        %1004 = vmatpush1.xpose.msra.mxu0 0.0
        %1005 = vmatprep.subr.mxu0 0.0
        %1006 = vmatpush1.xpose.msra.mxu0 0.0
        %1007 = vmatprep.subr.mxu0 0.0
        %1008 = vmatpush1.xpose.msra.mxu0 0.0
        %1009 = vmatprep.subr.mxu0 0.0
        %1010 = vmatpush1.xpose.msra.mxu0 0.0
        %1011 = vmatprep.subr.mxu0 0.0
        %1012 = vmatpush1.xpose.msra.mxu0 0.0
        %1013 = vmatprep.subr.mxu0 0.0
        %1014 = vmatpush1.xpose.msra.mxu0 0.0
        %1015 = vmatprep.subr.mxu0 0.0
        %1016 = vmatpush1.xpose.msra.mxu0 0.0
        %1017 = vmatprep.subr.mxu0 0.0
        %1018 = vmatpush1.xpose.msra.mxu0 0.0
        %1019 = vmatprep.subr.mxu0 0.0
        %1020 = vmatpush1.xpose.msra.mxu0 0.0
        %1021 = vmatprep.subr.mxu0 0.0
        %1022 = vmatpush1.xpose.msra.mxu0 0.0
        %1023 = vmatprep.subr.mxu0 0.0
        %1024 = vmatpush1.xpose.msra.mxu0 0.0
        %1025 = vmatprep.subr.mxu0 0.0
        %1026 = vmatpush1.xpose.msra.mxu0 0.0
        %1027 = vmatprep.subr.mxu0 0.0
        %1028 = vmatpush1.xpose.msra.mxu0 0.0
        %1029 = vmatprep.subr.mxu0 0.0
        %1030 = vmatpush1.xpose.msra.mxu0 0.0
        %1031 = vmatprep.subr.mxu0 0.0
        %1032 = vmatpush1.xpose.msra.mxu0 0.0
        %1033 = vmatprep.subr.mxu0 0.0
        %1034 = vmatpush1.xpose.msra.mxu0 0.0
        %1035 = vmatprep.subr.mxu0 0.0
        %1036 = vmatpush1.xpose.msra.mxu0 0.0
        %1037 = vmatprep.subr.mxu0 0.0
        %1038 = vmatpush1.xpose.msra.mxu0 0.0
        %1039 = vmatprep.subr.mxu0 0.0
        %1040 = vmatpush1.xpose.msra.mxu0 0.0
        %1041 = vmatprep.subr.mxu0 0.0
        %1042 = vmatpush1.xpose.msra.mxu0 0.0
        %1043 = vmatprep.mubr.f32.mxu0 0.0
        %1044 = vmatmul.mubr.f32.gmra.mrb[0].mxu0 %v974
        %v1045 = vpop.f32.mrb[0].mxu0
        %v1046 = vadd.f32 0.0, %v1045
        %v1047 = vpop.f32.mrb[0].mxu0
        %1048 = vdwg.mxu0
        %vm1049 = vcmask 64512
        %v1050 = vsel %vm1049, %v970, -inf
        %1051 = vmax.xlane.f32.xlu0 %v1050
        %v1052 = vpop.xlane.xlu0 %1051
        %v1053 = vsel %vm1049, %v1046, -inf
        %1054 = vmax.xlane.f32.xlu0 %v1053
        %v1055 = vpop.xlane.xlu0 %1054
        %v1056 = vsub.f32 %v970, %v1052
        %v1057 = vsub.f32 %v1046, %v1055
        %v1058 = vmul.f32 %v1056, 1.442695
        %v1059 = vpow.pop %v1058
        %v1060 = vmul.f32 %v1057, 1.442695
        %v1061 = vpow.pop %v1060
        %v1062 = vsel %vm1049, %v1059, 0.0
        %1063 = vadd.xlane.f32.xlu0 %v1062
        %v1064 = vpop.xlane.xlu0 %1063
        %v1065 = vsel %vm1049, %v1061, 0.0
        %1066 = vadd.xlane.f32.xlu0 %v1065
        %v1067 = vpop.xlane.xlu0 %1066
        %v1068 = vrcp.pop %v1064
        %v1069 = vrcp.pop %v1067
        %v1070 = vmul.f32 %v1059, %v1068
        %v1071 = vmul.f32 %v1061, %v1069
        %v1073 = vsel %vm1049, %v1070, 0
        %1075 = vmatprep.subr.mxu0 0.0
        %1076 = vmatpush1.msra.mxu0 %v894
        %1077 = vmatprep.subr.mxu0 0.0
        %1078 = vmatpush1.msra.mxu0 0.0
        %1079 = vmatprep.subr.mxu0 0.0
        %1080 = vmatpush1.msra.mxu0 0.0
        %1081 = vmatprep.subr.mxu0 0.0
        %1082 = vmatpush1.msra.mxu0 0.0
        %1083 = vmatprep.subr.mxu0 0.0
        %1084 = vmatpush1.msra.mxu0 0.0
        %1085 = vmatprep.subr.mxu0 0.0
        %1086 = vmatpush1.msra.mxu0 0.0
        %1087 = vmatprep.subr.mxu0 0.0
        %1088 = vmatpush1.msra.mxu0 0.0
        %1089 = vmatprep.subr.mxu0 0.0
        %1090 = vmatpush1.msra.mxu0 0.0
        %1091 = vmatprep.subr.mxu0 0.0
        %1092 = vmatpush1.msra.mxu0 0.0
        %1093 = vmatprep.subr.mxu0 0.0
        %1094 = vmatpush1.msra.mxu0 0.0
        %1095 = vmatprep.subr.mxu0 0.0
        %1096 = vmatpush1.msra.mxu0 0.0
        %1097 = vmatprep.subr.mxu0 0.0
        %1098 = vmatpush1.msra.mxu0 0.0
        %1099 = vmatprep.subr.mxu0 0.0
        %1100 = vmatpush1.msra.mxu0 0.0
        %1101 = vmatprep.subr.mxu0 0.0
        %1102 = vmatpush1.msra.mxu0 0.0
        %1103 = vmatprep.subr.mxu0 0.0
        %1104 = vmatpush1.msra.mxu0 0.0
        %1105 = vmatprep.subr.mxu0 0.0
        %1106 = vmatpush1.msra.mxu0 0.0
        %1107 = vmatprep.subr.mxu0 0.0
        %1108 = vmatpush1.msra.mxu0 0.0
        %1109 = vmatprep.subr.mxu0 0.0
        %1110 = vmatpush1.msra.mxu0 0.0
        %1111 = vmatprep.subr.mxu0 0.0
        %1112 = vmatpush1.msra.mxu0 0.0
        %1113 = vmatprep.subr.mxu0 0.0
        %1114 = vmatpush1.msra.mxu0 0.0
        %1115 = vmatprep.subr.mxu0 0.0
        %1116 = vmatpush1.msra.mxu0 0.0
        %1117 = vmatprep.subr.mxu0 0.0
        %1118 = vmatpush1.msra.mxu0 0.0
        %1119 = vmatprep.subr.mxu0 0.0
        %1120 = vmatpush1.msra.mxu0 0.0
        %1121 = vmatprep.subr.mxu0 0.0
        %1122 = vmatpush1.msra.mxu0 0.0
        %1123 = vmatprep.subr.mxu0 0.0
        %1124 = vmatpush1.msra.mxu0 0.0
        %1125 = vmatprep.subr.mxu0 0.0
        %1126 = vmatpush1.msra.mxu0 0.0
        %1127 = vmatprep.subr.mxu0 0.0
        %1128 = vmatpush1.msra.mxu0 0.0
        %1129 = vmatprep.subr.mxu0 0.0
        %1130 = vmatpush1.msra.mxu0 0.0
        %1131 = vmatprep.subr.mxu0 0.0
        %1132 = vmatpush1.msra.mxu0 0.0
        %1133 = vmatprep.subr.mxu0 0.0
        %1134 = vmatpush1.msra.mxu0 0.0
        %1135 = vmatprep.subr.mxu0 0.0
        %1136 = vmatpush1.msra.mxu0 0.0
        %1137 = vmatprep.subr.mxu0 0.0
        %1138 = vmatpush1.msra.mxu0 0.0
        %1139 = vmatprep.mubr.f32.mxu0 0.0
        %1140 = vmatmul.mubr.f32.gmra.mrb[0].mxu0 %v1073
        %v1141 = vpop.f32.mrb[0].mxu0
        %v1142 = vadd.f32 0.0, %v1141
        %v1143 = vpop.f32.mrb[0].mxu0
        %1144 = vdwg.mxu0
        %v1146 = vsel %vm1049, %v1071, 0
        %1148 = vmatprep.subr.mxu0 0.0
        %1149 = vmatpush1.msra.mxu0 %v895
        %1150 = vmatprep.subr.mxu0 0.0
        %1151 = vmatpush1.msra.mxu0 0.0
        %1152 = vmatprep.subr.mxu0 0.0
        %1153 = vmatpush1.msra.mxu0 0.0
        %1154 = vmatprep.subr.mxu0 0.0
        %1155 = vmatpush1.msra.mxu0 0.0
        %1156 = vmatprep.subr.mxu0 0.0
        %1157 = vmatpush1.msra.mxu0 0.0
        %1158 = vmatprep.subr.mxu0 0.0
        %1159 = vmatpush1.msra.mxu0 0.0
        %1160 = vmatprep.subr.mxu0 0.0
        %1161 = vmatpush1.msra.mxu0 0.0
        %1162 = vmatprep.subr.mxu0 0.0
        %1163 = vmatpush1.msra.mxu0 0.0
        %1164 = vmatprep.subr.mxu0 0.0
        %1165 = vmatpush1.msra.mxu0 0.0
        %1166 = vmatprep.subr.mxu0 0.0
        %1167 = vmatpush1.msra.mxu0 0.0
        %1168 = vmatprep.subr.mxu0 0.0
        %1169 = vmatpush1.msra.mxu0 0.0
        %1170 = vmatprep.subr.mxu0 0.0
        %1171 = vmatpush1.msra.mxu0 0.0
        %1172 = vmatprep.subr.mxu0 0.0
        %1173 = vmatpush1.msra.mxu0 0.0
        %1174 = vmatprep.subr.mxu0 0.0
        %1175 = vmatpush1.msra.mxu0 0.0
        %1176 = vmatprep.subr.mxu0 0.0
        %1177 = vmatpush1.msra.mxu0 0.0
        %1178 = vmatprep.subr.mxu0 0.0
        %1179 = vmatpush1.msra.mxu0 0.0
        %1180 = vmatprep.subr.mxu0 0.0
        %1181 = vmatpush1.msra.mxu0 0.0
        %1182 = vmatprep.subr.mxu0 0.0
        %1183 = vmatpush1.msra.mxu0 0.0
        %1184 = vmatprep.subr.mxu0 0.0
        %1185 = vmatpush1.msra.mxu0 0.0
        %1186 = vmatprep.subr.mxu0 0.0
        %1187 = vmatpush1.msra.mxu0 0.0
        %1188 = vmatprep.subr.mxu0 0.0
        %1189 = vmatpush1.msra.mxu0 0.0
        %1190 = vmatprep.subr.mxu0 0.0
        %1191 = vmatpush1.msra.mxu0 0.0
        %1192 = vmatprep.subr.mxu0 0.0
        %1193 = vmatpush1.msra.mxu0 0.0
        %1194 = vmatprep.subr.mxu0 0.0
        %1195 = vmatpush1.msra.mxu0 0.0
        %1196 = vmatprep.subr.mxu0 0.0
        %1197 = vmatpush1.msra.mxu0 0.0
        %1198 = vmatprep.subr.mxu0 0.0
        %1199 = vmatpush1.msra.mxu0 0.0
        %1200 = vmatprep.subr.mxu0 0.0
        %1201 = vmatpush1.msra.mxu0 0.0
        %1202 = vmatprep.subr.mxu0 0.0
        %1203 = vmatpush1.msra.mxu0 0.0
        %1204 = vmatprep.subr.mxu0 0.0
        %1205 = vmatpush1.msra.mxu0 0.0
        %1206 = vmatprep.subr.mxu0 0.0
        %1207 = vmatpush1.msra.mxu0 0.0
        %1208 = vmatprep.subr.mxu0 0.0
        %1209 = vmatpush1.msra.mxu0 0.0
        %1210 = vmatprep.subr.mxu0 0.0
        %1211 = vmatpush1.msra.mxu0 0.0
        %1212 = vmatprep.mubr.f32.mxu0 0.0
        %1213 = vmatmul.mubr.f32.gmra.mrb[0].mxu0 %v1146
        %v1214 = vpop.f32.mrb[0].mxu0
        %v1215 = vadd.f32 0.0, %v1214
        %v1216 = vpop.f32.mrb[0].mxu0
        %1217 = vdwg.mxu0
        %v1218 = vcombine.high %v1142, 0.0
        %v1220 = vunpack.c.l.s4 1983009808
        %v1221 = vunpack.c.0.s8 %v1220
        %v1222 = vlaneseq
        %v1223 = vshrl.u32 %v1222, 7
        %v1224 = vsub.s32 %v1221, %v1223
        %v1225 = vrot.slane %v1142, %v1224
        %v1227 = vunpack.c.l.s4 1983009808
        %v1228 = vunpack.c.0.s8 %v1227
        %v1229 = vlaneseq
        %v1230 = vshrl.u32 %v1229, 7
        %v1231 = vsub.s32 %v1228, %v1230
        %v1232 = vrot.slane %v1218, %v1231
        %v1233 = vcombine.high %v1215, 0.0
        %v1235 = vunpack.c.l.s4 1983009808
        %v1236 = vunpack.c.0.s8 %v1235
        %v1237 = vlaneseq
        %v1238 = vshrl.u32 %v1237, 7
        %v1239 = vsub.s32 %v1236, %v1238
        %v1240 = vrot.slane %v1215, %v1239
        %v1242 = vunpack.c.l.s4 1983009808
        %v1243 = vunpack.c.0.s8 %v1242
        %v1244 = vlaneseq
        %v1245 = vshrl.u32 %v1244, 7
        %v1246 = vsub.s32 %v1243, %v1245
        %v1247 = vrot.slane %v1233, %v1246
        %v1248 = vcombine.low %v1225, %v1240
        %v1249 = vcombine.high %v1225, %v1240
        %v1251 = vunpack.c.l.s4 1934713408
        %v1252 = vunpack.c.0.s8 %v1251
        %v1253 = vlaneseq
        %v1254 = vshrl.u32 %v1253, 7
        %v1255 = vsub.s32 %v1252, %v1254
        %v1256 = vrot.slane %v1248, %v1255
        %v1258 = vunpack.c.l.s4 1934713408
        %v1259 = vunpack.c.0.s8 %v1258
        %v1260 = vlaneseq
        %v1261 = vshrl.u32 %v1260, 7
        %v1262 = vsub.s32 %v1259, %v1261
        %v1263 = vrot.slane %v1249, %v1262
        %v1264 = vcombine.low %v1232, %v1247
        %v1265 = vcombine.high %v1232, %v1247
        %v1267 = vunpack.c.l.s4 1934713408
        %v1268 = vunpack.c.0.s8 %v1267
        %v1269 = vlaneseq
        %v1270 = vshrl.u32 %v1269, 7
        %v1271 = vsub.s32 %v1268, %v1270
        %v1272 = vrot.slane %v1264, %v1271
        %v1274 = vunpack.c.l.s4 1934713408
        %v1275 = vunpack.c.0.s8 %v1274
        %v1276 = vlaneseq
        %v1277 = vshrl.u32 %v1276, 7
        %v1278 = vsub.s32 %v1275, %v1277
        %v1279 = vrot.slane %v1265, %v1278
        %v1280 = vcombine.high %v1256, 0.0
        %v1281 = vcombine.high %v1263, 0.0
        %v1282 = vcombine.high %v1272, 0.0
        %v1283 = vcombine.high %v1279, 0.0
        %v1284 = vcombine.low %v1256, %v1263
        %v1286 = vunpack.c.l.s4 1983009808
        %v1287 = vunpack.c.0.s8 %v1286
        %v1288 = vlaneseq
        %v1289 = vshrl.u32 %v1288, 7
        %v1290 = vsub.s32 %v1287, %v1289
        %v1291 = vrot.slane %v1284, %v1290
        %v1292 = vcombine.low %v1280, %v1281
        %v1294 = vunpack.c.l.s4 1983009808
        %v1295 = vunpack.c.0.s8 %v1294
        %v1296 = vlaneseq
        %v1297 = vshrl.u32 %v1296, 7
        %v1298 = vsub.s32 %v1295, %v1297
        %v1299 = vrot.slane %v1292, %v1298
        %v1300 = vcombine.low %v1272, %v1279
        %v1302 = vunpack.c.l.s4 1983009808
        %v1303 = vunpack.c.0.s8 %v1302
        %v1304 = vlaneseq
        %v1305 = vshrl.u32 %v1304, 7
        %v1306 = vsub.s32 %v1303, %v1305
        %v1307 = vrot.slane %v1300, %v1306
        %v1308 = vcombine.low %v1282, %v1283
        %v1310 = vunpack.c.l.s4 1983009808
        %v1311 = vunpack.c.0.s8 %v1310
        %v1312 = vlaneseq
        %v1313 = vshrl.u32 %v1312, 7
        %v1314 = vsub.s32 %v1311, %v1313
        %v1315 = vrot.slane %v1308, %v1314
        %v1316 = vcombine.low %v1291, %v1299
        %v1318 = vunpack.c.l.s4 1934713408
        %v1319 = vunpack.c.0.s8 %v1318
        %v1320 = vlaneseq
        %v1321 = vshrl.u32 %v1320, 7
        %v1322 = vsub.s32 %v1319, %v1321
        %v1323 = vrot.slane %v1316, %v1322
        %v1324 = vcombine.low %v1307, %v1315
        %v1326 = vunpack.c.l.s4 1934713408
        %v1327 = vunpack.c.0.s8 %v1326
        %v1328 = vlaneseq
        %v1329 = vshrl.u32 %v1328, 7
        %v1330 = vsub.s32 %v1327, %v1329
        %v1331 = vrot.slane %v1324, %v1330
        %v1332 = vcombine.low %v1323, %v1331
        %v1333 = vcombine.high %v1323, %v1331
        %1335 = vrot.lane.b32.xlu0 %v1333, 16
        %v1336 = vpop.permute.xlu0 %1335
        %v1338 = vsel %vm896, %v1332, %v1336
        %v1339 = vld [vmem:[%s4] sm:$0xff]
        %v1340 = vld [vmem:[%s4 + $0x8] sm:$0xff]
        %v1341 = vld [vmem:[%s4 + $0x10] sm:$0xff]
        %v1342 = vld [vmem:[%s4 + $0x18] sm:$0xff]
        %v1343 = vld [vmem:[%s5] sm:$0x1]
        %v1345 = vlaneseq
        %v1346 = vshrl.u32 %v1345, 7
        %v1347 = vsub.s32 0, %v1346
        %v1348 = vrot.slane %v1343, %v1347
        %vm1350 = vcmask 261120
        %v1352 = vsel %vm1350, %v1338, 0
        %1354 = vmatprep.subr.mxu0 0.0
        %1355 = vmatpush1.msra.mxu0 %v1339
        %1356 = vmatprep.subr.mxu0 0.0
        %1357 = vmatpush1.msra.mxu0 %v1340
        %1358 = vmatprep.subr.mxu0 0.0
        %1359 = vmatpush1.msra.mxu0 %v1341
        %1360 = vmatprep.subr.mxu0 0.0
        %1361 = vmatpush1.msra.mxu0 %v1342
        %1362 = vmatprep.subr.mxu0 0.0
        %1363 = vmatpush1.msra.mxu0 0.0
        %1364 = vmatprep.subr.mxu0 0.0
        %1365 = vmatpush1.msra.mxu0 0.0
        %1366 = vmatprep.subr.mxu0 0.0
        %1367 = vmatpush1.msra.mxu0 0.0
        %1368 = vmatprep.subr.mxu0 0.0
        %1369 = vmatpush1.msra.mxu0 0.0
        %1370 = vmatprep.subr.mxu0 0.0
        %1371 = vmatpush1.msra.mxu0 0.0
        %1372 = vmatprep.subr.mxu0 0.0
        %1373 = vmatpush1.msra.mxu0 0.0
        %1374 = vmatprep.subr.mxu0 0.0
        %1375 = vmatpush1.msra.mxu0 0.0
        %1376 = vmatprep.subr.mxu0 0.0
        %1377 = vmatpush1.msra.mxu0 0.0
        %1378 = vmatprep.subr.mxu0 0.0
        %1379 = vmatpush1.msra.mxu0 0.0
        %1380 = vmatprep.subr.mxu0 0.0
        %1381 = vmatpush1.msra.mxu0 0.0
        %1382 = vmatprep.subr.mxu0 0.0
        %1383 = vmatpush1.msra.mxu0 0.0
        %1384 = vmatprep.subr.mxu0 0.0
        %1385 = vmatpush1.msra.mxu0 0.0
        %1386 = vmatprep.subr.mxu0 0.0
        %1387 = vmatpush1.msra.mxu0 0.0
        %1388 = vmatprep.subr.mxu0 0.0
        %1389 = vmatpush1.msra.mxu0 0.0
        %1390 = vmatprep.subr.mxu0 0.0
        %1391 = vmatpush1.msra.mxu0 0.0
        %1392 = vmatprep.subr.mxu0 0.0
        %1393 = vmatpush1.msra.mxu0 0.0
        %1394 = vmatprep.subr.mxu0 0.0
        %1395 = vmatpush1.msra.mxu0 0.0
        %1396 = vmatprep.subr.mxu0 0.0
        %1397 = vmatpush1.msra.mxu0 0.0
        %1398 = vmatprep.subr.mxu0 0.0
        %1399 = vmatpush1.msra.mxu0 0.0
        %1400 = vmatprep.subr.mxu0 0.0
        %1401 = vmatpush1.msra.mxu0 0.0
        %1402 = vmatprep.subr.mxu0 0.0
        %1403 = vmatpush1.msra.mxu0 0.0
        %1404 = vmatprep.subr.mxu0 0.0
        %1405 = vmatpush1.msra.mxu0 0.0
        %1406 = vmatprep.subr.mxu0 0.0
        %1407 = vmatpush1.msra.mxu0 0.0
        %1408 = vmatprep.subr.mxu0 0.0
        %1409 = vmatpush1.msra.mxu0 0.0
        %1410 = vmatprep.subr.mxu0 0.0
        %1411 = vmatpush1.msra.mxu0 0.0
        %1412 = vmatprep.subr.mxu0 0.0
        %1413 = vmatpush1.msra.mxu0 0.0
        %1414 = vmatprep.subr.mxu0 0.0
        %1415 = vmatpush1.msra.mxu0 0.0
        %1416 = vmatprep.subr.mxu0 0.0
        %1417 = vmatpush1.msra.mxu0 0.0
        %1418 = vmatprep.mubr.f32.mxu0 0.0
        %1419 = vmatmul.mubr.f32.gmra.mrb[0].mxu0 %v1352
        %v1420 = vpop.f32.mrb[0].mxu0
        %v1421 = vadd.f32 %v1348, %v1420
        %v1422 = vpop.f32.mrb[0].mxu0
        %1423 = vdwg.mxu0
        %1424 = vst [vmem:[%s256] sm:$0xff] %v1421
        %s1425 = sand.u32 %s173, 1
        %s1426 = scalar_lea.sflag [#allocation5], %s1425
        %s1427 = sand.u32 %s173, 1
        %s1428 = smul.addr %s1427, 8
        %s1429 = scalar_lea.vmem [#allocation4], %s1428
        // Predicated region
        $region49: #{tpu_custom_call.1} parent=43 // pred_check
          %p1430 = pneg %p183
        $region50: #{tpu_custom_call.1} parent=43 // pred_check_branch
          %1432 = sbr.rel (%p1430) target = $region52
        $region51: #{tpu_custom_call.1} parent=43 // pred_region
          %s1434 = ssub.s32 128, 128
          %1435 = vsyncadd %s1426, %s1434
          %s1436 = sadd.s32 %s25, %s24
          %s1437 = smul.addr %s1436, 128
          %s1438 = scalar_lea.hbm %s6, %s1437
          %s1440 = sshll.u32 %s1429, 4
          %s1441 = int_to_ptr.vmem [resolvable:$true] %s1440
          %1443 = dma.vmem_to_hbm [thread:$0]  %s1441, 128, %s1438, %s1426
        $region52: #{tpu_custom_call.1} parent=43 // pred_fallthru
          _
      $region44: #{tpu_custom_call.1} parent=5 // pred_fallthru
        _
      %p1444 = scmp.le.s32.totalorder 2, %s15
      // Predicated region
      $region53: #{tpu_custom_call.1} parent=5 // pred_check
        %p1445 = pneg %p1444
      $region54: #{tpu_custom_call.1} parent=5 // pred_check_branch
        %1447 = sbr.rel (%p1445) target = $region56
      $region55: #{tpu_custom_call.1} parent=5 // pred_region
        %s1448 = ssub.s32 %s15, 2
        // Predicated region
        $region57: #{tpu_custom_call.1} parent=55 // pred_check
          %p1449 = pneg %p189
        $region58: #{tpu_custom_call.1} parent=55 // pred_check_branch
          %1451 = sbr.rel (%p1449) target = $region60
        $region59: #{tpu_custom_call.1} parent=55 // pred_region
          %s1452 = sand.u32 %s174, 1
          %s1453 = scalar_lea.sflag [#allocation5], %s1452
          %s1454 = sand.u32 %s174, 1
          %s1455 = smul.addr %s1454, 8
          %s1456 = scalar_lea.vmem [#allocation4], %s1455
          %1457 = dma.done %s1453, 128
        $region60: #{tpu_custom_call.1} parent=55 // pred_fallthru
          _
      $region56: #{tpu_custom_call.1} parent=5 // pred_fallthru
        _
    $region6: #{tpu_custom_call.1} parent=1 // loop_footer
      %s19 = sadd.s32 1, %s15
    $region7: #{tpu_custom_call.1} parent=1 // loop_footer_branch
      %14 = sbr.rel target = $region3
    $region8: #{tpu_custom_call.1} parent=1 // loop_exit
      _
    %1458 = vsyncpa [#allocation5], 1
    %s1459 = scalar_lea.sflag [#allocation5], 1
    %1460 = vsyncpa %s1459, 1

</llo_original>
